<compile_context>
chip_gen: v7x
topology: tpu7x:2x2x1
jax: 0.10.0
libtpu: 0.0.40
codegen_flags: <defaults>
</compile_context>

<pallas_src>
import functools

import numpy as np
import jax
import jax.numpy as jnp
from jax.experimental import pallas as pl
from jax.experimental.pallas import tpu as pltpu


# ----------------------------------------------------------------------------
# Fused kernel: one grid step per batch element.
# ----------------------------------------------------------------------------

def _upblock_kernel(*refs, has_skip, up_lanes):
    if has_skip:
        (x1_ref, x2_ref, mh_ref, k1_ref, b1_ref,
         ac_ref, bb1_ref, a3_ref, bb2_ref,
         o_ref, cat_ref, zp_ref) = refs
    else:
        (x1_ref, mh_ref, k1_ref, b1_ref,
         ac_ref, bb1_ref, a3_ref, bb2_ref,
         o_ref, cat_ref, zp_ref) = refs
        x2_ref = None

    H = o_ref.shape[1]            # output rows (= 2 * H1)
    Wco = o_ref.shape[2]          # W * Cout (lane axis, 128 here)
    Kc = cat_ref.shape[1]         # W * (C1 + C2) concat lane width

    # --- conv1x1 + bilinear 2x upsample (align_corners=True) as two matmuls ---
    # Row interpolation:  (2H1, H1) @ (H1, W1*C1)
    t = jnp.dot(mh_ref[...], x1_ref[0], preferred_element_type=jnp.float32)
    # Column interpolation fused with the 1x1 channel mix: k1 = kron(Mw^T, W_1x1).
    # Bias added afterwards (interp weights sum to 1, so this is exact).
    up = jnp.dot(t, k1_ref[...], preferred_element_type=jnp.float32) + b1_ref[...]
    # up: (2H1, 2W1*C1) == (H, W*C1) channels-last, width folded into lanes.

    # --- padded "concat" scratch:  lanes = [ up (W*C1) | skip (W*C2) ] ---------
    # Only H needs zero-padding (two boundary rows); the width SAME-padding is
    # already encoded in the banded weight matrices.
    cat_ref[0:1, :] = jnp.zeros((1, Kc), jnp.float32)
    cat_ref[H + 1:H + 2, :] = jnp.zeros((1, Kc), jnp.float32)
    cat_ref[1:H + 1, 0:up_lanes] = up                     # vreg-aligned offset 0
    if has_skip:
        cat_ref[1:H + 1, up_lanes:Kc] = x2_ref[0]

    # --- conv1 3x3 (pad=1) + folded BN + LeakyReLU: 3 banded matmuls ----------
    acc = jnp.zeros((H, Wco), jnp.float32)
    for kh in range(3):
        acc = acc + jnp.dot(cat_ref[kh:kh + H, :], ac_ref[kh],
                            preferred_element_type=jnp.float32)
    z = acc + bb1_ref[...]
    z = jnp.where(z >= 0.0, z, 0.01 * z)                  # LeakyReLU (slope 0.01)

    # Dropout: identity in eval mode.

    # --- conv2 3x3 + folded BN + LeakyReLU -------------------------------------
    zp_ref[0:1, :] = jnp.zeros((1, Wco), jnp.float32)
    zp_ref[H + 1:H + 2, :] = jnp.zeros((1, Wco), jnp.float32)
    zp_ref[1:H + 1, :] = z
    acc2 = jnp.zeros((H, Wco), jnp.float32)
    for kh in range(3):
        acc2 = acc2 + jnp.dot(zp_ref[kh:kh + H, :], a3_ref[kh],
                              preferred_element_type=jnp.float32)
    z2 = acc2 + bb2_ref[...]
    z2 = jnp.where(z2 >= 0.0, z2, 0.01 * z2)

    o_ref[0] = z2                 # (H, W*Cout): lane-dense, unmasked store


# ----------------------------------------------------------------------------
# Wrapper-side (pure JAX/XLA) weight algebra.
# ----------------------------------------------------------------------------

def _interp_matrix(in_size, out_size):
    """1-D linear interpolation matrix (align_corners=True), shape (out, in)."""
    if out_size == 1:
        src = np.zeros((1,), np.float64)
    else:
        src = np.arange(out_size, dtype=np.float64) * (in_size - 1) / (out_size - 1)
    i0 = np.clip(np.floor(src).astype(np.int64), 0, in_size - 1)
    i1 = np.minimum(i0 + 1, in_size - 1)
    w1 = (src - i0).astype(np.float32)
    w0 = 1.0 - w1
    M = np.zeros((out_size, in_size), np.float32)
    M[np.arange(out_size), i0] += w0
    M[np.arange(out_size), i1] += w1
    return M


def _shift_masks(W):
    """masks[kw][w_in, w_out] = 1 iff w_in == w_out + kw - 1 (SAME pad band)."""
    masks = []
    for kw in range(3):
        m = np.zeros((W, W), np.float32)
        w_out = np.arange(W)
        w_in = w_out + kw - 1
        ok = (w_in >= 0) & (w_in < W)
        m[w_in[ok], w_out[ok]] = 1.0
        masks.append(m)
    return masks


def _banded_conv_mats(w_hwio, W):
    """(3,3,Cin,Cout) conv weights -> (3, W*Cin, W*Cout) banded matrices B so that
       sum_kh x_padH[kh:kh+H] @ B[kh] == Conv2d(3x3, padding=1)
    in the channels-last (rows, W*C) layout (only H needs zero-padding)."""
    Cin, Cout = int(w_hwio.shape[2]), int(w_hwio.shape[3])
    masks = _shift_masks(W)
    mats = []
    for kh in range(3):
        B = jnp.zeros((W, Cin, W, Cout), jnp.float32)
        for kw in range(3):
            B = B + jnp.einsum("vw,io->viwo", jnp.asarray(masks[kw]), w_hwio[kh, kw])
        mats.append(B.reshape(W * Cin, W * Cout))
    return jnp.stack(mats, axis=0)


# ----------------------------------------------------------------------------
# UpBlock forward (bilinear=True path), NCHW in / NCHW out.
# ----------------------------------------------------------------------------

@jax.jit
def up_block_forward(x1_nchw, x2_nchw, p):
    N, C1, H1, W1 = x1_nchw.shape
    C2 = x2_nchw.shape[1]
    H2, W2 = 2 * H1, 2 * W1
    Cout = p["wc2"].shape[-1]
    has_skip = C2 > 0
    up_lanes = W2 * C1
    Kc = W2 * (C1 + C2)

    # Channels-last with the width axis folded into lanes.
    x1_flat = jnp.transpose(x1_nchw, (0, 2, 3, 1)).reshape(N, H1, W1 * C1)
    if has_skip:
        x2_flat = jnp.transpose(x2_nchw, (0, 2, 3, 1)).reshape(N, H2, W2 * C2)

    # Bilinear 2x, align_corners=True.
    mh = jnp.asarray(_interp_matrix(H1, H2))                 # (2H1, H1)
    mw = jnp.asarray(_interp_matrix(W1, W2))                 # (2W1, W1)
    # Column interp fused with the 1x1 conv channel mix: kron(Mw^T, W_1x1).
    k1 = jnp.einsum("pw,cd->wcpd", mw, p["w1x1"]).reshape(W1 * C1, W2 * C1)
    b1 = jnp.tile(p["b1x1"], W2).reshape(1, W2 * C1)

    # Fold BN (eval) scale into conv weights, shift+bias into one tiled bias.
    wc1 = p["wc1"] * p["s1"]
    bb1 = jnp.tile(p["bc1"] * p["s1"] + p["t1"], W2).reshape(1, W2 * Cout)
    wc2 = p["wc2"] * p["s2"]
    bb2 = jnp.tile(p["bc2"] * p["s2"] + p["t2"], W2).reshape(1, W2 * Cout)

    # Banded 3x3-conv matrices.  conv1's input-channel axis is reordered to the
    # in-kernel lane layout [up (C1) | skip (C2)] and fused into ONE K axis.
    a_up = _banded_conv_mats(wc1[:, :, C2:, :], W2)          # (3, W2*C1,  W2*Cout)
    a3 = _banded_conv_mats(wc2, W2)                          # (3, W2*Cout, W2*Cout)
    if has_skip:
        a_skip = _banded_conv_mats(wc1[:, :, :C2, :], W2)    # (3, W2*C2,  W2*Cout)
        ac = jnp.concatenate([a_up, a_skip], axis=1)         # (3, Kc,     W2*Cout)
    else:
        ac = a_up

    def rep(shape):
        nd = len(shape)
        return pl.BlockSpec(shape, lambda n, _nd=nd: (0,) * _nd)

    in_specs = [pl.BlockSpec((1, H1, W1 * C1), lambda n: (n, 0, 0))]
    args = [x1_flat]
    if has_skip:
        in_specs.append(pl.BlockSpec((1, H2, W2 * C2), lambda n: (n, 0, 0)))
        args.append(x2_flat)
    in_specs += [rep((H2, H1)), rep((W1 * C1, W2 * C1)), rep((1, W2 * C1)),
                 rep((3, Kc, W2 * Cout)), rep((1, W2 * Cout)),
                 rep((3, W2 * Cout, W2 * Cout)), rep((1, W2 * Cout))]
    args += [mh, k1, b1, ac, bb1, a3, bb2]

    scratch = [pltpu.VMEM((H2 + 2, Kc), jnp.float32),
               pltpu.VMEM((H2 + 2, W2 * Cout), jnp.float32)]

    out = pl.pallas_call(
        functools.partial(_upblock_kernel, has_skip=has_skip, up_lanes=up_lanes),
        grid=(N,),
        in_specs=in_specs,
        out_specs=pl.BlockSpec((1, H2, W2 * Cout), lambda n: (n, 0, 0)),
        out_shape=jax.ShapeDtypeStruct((N, H2, W2 * Cout), jnp.float32),
        scratch_shapes=scratch,
        compiler_params=pltpu.CompilerParams(dimension_semantics=("parallel",)),
    )(*args)

    return jnp.transpose(out.reshape(N, H2, W2, Cout), (0, 3, 1, 2))


# ----------------------------------------------------------------------------
# Deterministic parameter init and pure-JAX reference for validation.
# ----------------------------------------------------------------------------

def init_params(key, c1, c2, cout, eps=1e-5):
    ks = jax.random.split(key, 10)
    cin_block = c1 + max(c2, 0)

    def bn_fold(gamma, beta, mean=0.0, var=1.0):
        scale = gamma / jnp.sqrt(var + eps)
        shift = beta - mean * scale
        return scale, shift

    g1 = 1.0 + 0.1 * jax.random.normal(ks[6], (cout,), jnp.float32)
    b1 = 0.1 * jax.random.normal(ks[7], (cout,), jnp.float32)
    g2 = 1.0 + 0.1 * jax.random.normal(ks[8], (cout,), jnp.float32)
    b2 = 0.1 * jax.random.normal(ks[9], (cout,), jnp.float32)
    s1, t1 = bn_fold(g1, b1)
    s2, t2 = bn_fold(g2, b2)

    return {
        "w1x1": 0.1 * jax.random.normal(ks[0], (c1, c1), jnp.float32),
        "b1x1": 0.1 * jax.random.normal(ks[1], (c1,), jnp.float32),
        "wc1": 0.1 * jax.random.normal(ks[2], (3, 3, cin_block, cout), jnp.float32),
        "bc1": 0.1 * jax.random.normal(ks[3], (cout,), jnp.float32),
        "wc2": 0.1 * jax.random.normal(ks[4], (3, 3, cout, cout), jnp.float32),
        "bc2": 0.1 * jax.random.normal(ks[5], (cout,), jnp.float32),
        "s1": s1, "t1": t1, "s2": s2, "t2": t2,
    }


def reference_forward(x1_nchw, x2_nchw, p):
    x1 = jnp.transpose(x1_nchw, (0, 2, 3, 1))
    x2 = jnp.transpose(x2_nchw, (0, 2, 3, 1))
    y = jnp.einsum("nhwc,cd->nhwd", x1, p["w1x1"]) + p["b1x1"]
    N, H, W, C = y.shape
    Mh = jnp.asarray(_interp_matrix(H, 2 * H))
    Mw = jnp.asarray(_interp_matrix(W, 2 * W))
    y = jnp.einsum("oh,nhwc->nowc", Mh, y)
    y = jnp.einsum("pw,nowc->nopc", Mw, y)
    x = jnp.concatenate([x2, y], axis=-1) if x2.shape[-1] > 0 else y

    def cbl(x, w, b, s, t):
        z = jax.lax.conv_general_dilated(
            x, w, window_strides=(1, 1), padding="SAME",
            dimension_numbers=("NHWC", "HWIO", "NHWC")) + b
        z = z * s + t
        return jnp.where(z >= 0.0, z, 0.01 * z)

    x = cbl(x, p["wc1"], p["bc1"], p["s1"], p["t1"])
    x = cbl(x, p["wc2"], p["bc2"], p["s2"], p["t2"])
    return jnp.transpose(x, (0, 3, 1, 2))


# ----------------------------------------------------------------------------

if __name__ == "__main__":
    key = jax.random.PRNGKey(0)
    k_x1, k_x2, k_p, k_p0 = jax.random.split(key, 4)

    # UpBlock(in_channels1=8, in_channels2=4, out_channels=8, dropout_p=0.0, bilinear=True)
    N, C1, C2, COUT = 2, 8, 4, 8
    H1 = W1 = 8          # deep feature (to be upsampled)
    H2 = W2 = 16         # skip connection (2x spatial)

    x1 = jax.random.normal(k_x1, (N, C1, H1, W1), jnp.float32)   # NCHW
    x2 = jax.random.normal(k_x2, (N, C2, H2, W2), jnp.float32)   # NCHW
    params = init_params(k_p, C1, C2, COUT)

    out = jax.block_until_ready(up_block_forward(x1, x2, params))
    assert out.shape == (N, COUT, H2, W2), out.shape
    ref = jax.block_until_ready(reference_forward(x1, x2, params))
    err = float(jnp.max(jnp.abs(out - ref)))
    assert err < 1e-3, f"max abs error {err}"

    # Decoder's up5: UpBlock(in_channels1=8, in_channels2=0, out_channels=8)
    params0 = init_params(k_p0, C1, 0, C1)
    x2_empty = jnp.zeros((N, 0, H2, W2), jnp.float32)
    out0 = jax.block_until_ready(up_block_forward(x1, x2_empty, params0))
    ref0 = jax.block_until_ready(reference_forward(x1, x2_empty, params0))
    err0 = float(jnp.max(jnp.abs(out0 - ref0)))
    assert err0 < 1e-3, f"max abs error (no-skip) {err0}"

    print("KERNEL_OK")
</pallas_src>

<mosaic_0001>
module attributes {stable_mosaic.version = 11 : i64} {
  func.func @_upblock_kernel(%arg0: i32, %arg1: memref<1x8x64xf32, #tpu.memory_space<vmem>>, %arg2: memref<1x16x64xf32, #tpu.memory_space<vmem>>, %arg3: memref<16x8xf32, #tpu.memory_space<vmem>>, %arg4: memref<64x128xf32, #tpu.memory_space<vmem>>, %arg5: memref<1x128xf32, #tpu.memory_space<vmem>>, %arg6: memref<3x192x128xf32, #tpu.memory_space<vmem>>, %arg7: memref<1x128xf32, #tpu.memory_space<vmem>>, %arg8: memref<3x128x128xf32, #tpu.memory_space<vmem>>, %arg9: memref<1x128xf32, #tpu.memory_space<vmem>>, %arg10: memref<1x16x128xf32, #tpu.memory_space<vmem>>, %arg11: memref<18x192xf32, #tpu.memory_space<vmem>>, %arg12: memref<18x128xf32, #tpu.memory_space<vmem>>) attributes {dimension_semantics = [#tpu.dimension_semantics<parallel>], iteration_bounds = array<i64: 2>, scalar_prefetch = 0 : i64, scratch_operands = 2 : i64, tpu.core_type = #tpu.core_type<tc>, window_params = [{transform_indices = @transform_0, window_bounds = array<i64: 1, 8, 64>}, {transform_indices = @transform_1, window_bounds = array<i64: 1, 16, 64>}, {pipeline_mode = #tpu.pipeline_mode<synchronous>, transform_indices = @transform_2, window_bounds = array<i64: 16, 8>}, {pipeline_mode = #tpu.pipeline_mode<synchronous>, transform_indices = @transform_3, window_bounds = array<i64: 64, 128>}, {pipeline_mode = #tpu.pipeline_mode<synchronous>, transform_indices = @transform_4, window_bounds = array<i64: 1, 128>}, {pipeline_mode = #tpu.pipeline_mode<synchronous>, transform_indices = @transform_5, window_bounds = array<i64: 3, 192, 128>}, {pipeline_mode = #tpu.pipeline_mode<synchronous>, transform_indices = @transform_6, window_bounds = array<i64: 1, 128>}, {pipeline_mode = #tpu.pipeline_mode<synchronous>, transform_indices = @transform_7, window_bounds = array<i64: 3, 128, 128>}, {pipeline_mode = #tpu.pipeline_mode<synchronous>, transform_indices = @transform_8, window_bounds = array<i64: 1, 128>}, {transform_indices = @transform_9, window_bounds = array<i64: 1, 16, 128>}]} {
    %c0 = arith.constant 0 : index
    %c0_0 = arith.constant 0 : index
    %0 = vector.load %arg3[%c0, %c0_0] : memref<16x8xf32, #tpu.memory_space<vmem>>, vector<16x8xf32>
    %c0_1 = arith.constant 0 : index
    %c0_2 = arith.constant 0 : index
    %c0_3 = arith.constant 0 : index
    %1 = vector.load %arg1[%c0_1, %c0_2, %c0_3] : memref<1x8x64xf32, #tpu.memory_space<vmem>>, vector<1x8x64xf32>
    %2 = vector.shape_cast %1 : vector<1x8x64xf32> to vector<8x64xf32>
    %cst = arith.constant dense<0.000000e+00> : vector<16x64xf32>
    %3 = tpu.matmul %0, %2, %cst {dimension_numbers = #tpu.dot_dimension_numbers<[1], [0], [0], [1], [0, 0, 1, 1], [], []>} : vector<16x8xf32>, vector<8x64xf32>, vector<16x64xf32> -> vector<16x64xf32>
    %c0_4 = arith.constant 0 : index
    %c0_5 = arith.constant 0 : index
    %4 = vector.load %arg4[%c0_4, %c0_5] : memref<64x128xf32, #tpu.memory_space<vmem>>, vector<64x128xf32>
    %cst_6 = arith.constant dense<0.000000e+00> : vector<16x128xf32>
    %5 = tpu.matmul %3, %4, %cst_6 {dimension_numbers = #tpu.dot_dimension_numbers<[1], [0], [0], [1], [0, 0, 1, 1], [], []>} : vector<16x64xf32>, vector<64x128xf32>, vector<16x128xf32> -> vector<16x128xf32>
    %c0_7 = arith.constant 0 : index
    %c0_8 = arith.constant 0 : index
    %6 = vector.load %arg5[%c0_7, %c0_8] : memref<1x128xf32, #tpu.memory_space<vmem>>, vector<1x128xf32>
    %7 = vector.broadcast %6 : vector<1x128xf32> to vector<16x128xf32>
    %8 = arith.addf %5, %7 : vector<16x128xf32>
    %cst_9 = arith.constant 0.000000e+00 : f32
    %9 = vector.broadcast %cst_9 : f32 to vector<1x192xf32>
    %c0_10 = arith.constant 0 : index
    %c0_11 = arith.constant 0 : index
    %10 = vector.load %arg11[%c0_10, %c0_11] : memref<18x192xf32, #tpu.memory_space<vmem>>, vector<1x192xf32>
    tpu.vector_store %arg11[%c0_10, %c0_11], %9 {strides = array<i32>} : memref<18x192xf32, #tpu.memory_space<vmem>>, vector<1x192xf32>,
    %cst_12 = arith.constant 0.000000e+00 : f32
    %11 = vector.broadcast %cst_12 : f32 to vector<1x192xf32>
    %c17 = arith.constant 17 : index
    %c0_13 = arith.constant 0 : index
    %12 = vector.load %arg11[%c17, %c0_13] : memref<18x192xf32, #tpu.memory_space<vmem>>, vector<1x192xf32>
    tpu.vector_store %arg11[%c17, %c0_13], %11 {strides = array<i32>} : memref<18x192xf32, #tpu.memory_space<vmem>>, vector<1x192xf32>,
    %c1 = arith.constant 1 : index
    %c0_14 = arith.constant 0 : index
    %13 = vector.load %arg11[%c1, %c0_14] : memref<18x192xf32, #tpu.memory_space<vmem>>, vector<16x128xf32>
    tpu.vector_store %arg11[%c1, %c0_14], %8 {strides = array<i32>} : memref<18x192xf32, #tpu.memory_space<vmem>>, vector<16x128xf32>,
    %c0_15 = arith.constant 0 : index
    %c0_16 = arith.constant 0 : index
    %c0_17 = arith.constant 0 : index
    %14 = vector.load %arg2[%c0_15, %c0_16, %c0_17] : memref<1x16x64xf32, #tpu.memory_space<vmem>>, vector<1x16x64xf32>
    %15 = vector.shape_cast %14 : vector<1x16x64xf32> to vector<16x64xf32>
    %c1_18 = arith.constant 1 : index
    %c128 = arith.constant 128 : index
    %16 = vector.load %arg11[%c1_18, %c128] : memref<18x192xf32, #tpu.memory_space<vmem>>, vector<16x64xf32>
    tpu.vector_store %arg11[%c1_18, %c128], %15 {strides = array<i32>} : memref<18x192xf32, #tpu.memory_space<vmem>>, vector<16x64xf32>,
    %cst_19 = arith.constant 0.000000e+00 : f32
    %17 = vector.broadcast %cst_19 : f32 to vector<16x128xf32>
    %c0_20 = arith.constant 0 : index
    %c0_21 = arith.constant 0 : index
    %18 = vector.load %arg11[%c0_20, %c0_21] : memref<18x192xf32, #tpu.memory_space<vmem>>, vector<16x192xf32>
    %c0_22 = arith.constant 0 : index
    %c0_23 = arith.constant 0 : index
    %c0_24 = arith.constant 0 : index
    %19 = vector.load %arg6[%c0_22, %c0_23, %c0_24] : memref<3x192x128xf32, #tpu.memory_space<vmem>>, vector<1x192x128xf32>
    %20 = vector.shape_cast %19 : vector<1x192x128xf32> to vector<192x128xf32>
    %cst_25 = arith.constant dense<0.000000e+00> : vector<16x128xf32>
    %21 = tpu.matmul %18, %20, %cst_25 {dimension_numbers = #tpu.dot_dimension_numbers<[1], [0], [0], [1], [0, 0, 1, 1], [], []>} : vector<16x192xf32>, vector<192x128xf32>, vector<16x128xf32> -> vector<16x128xf32>
    %22 = arith.addf %17, %21 : vector<16x128xf32>
    %c1_26 = arith.constant 1 : index
    %c0_27 = arith.constant 0 : index
    %23 = vector.load %arg11[%c1_26, %c0_27] : memref<18x192xf32, #tpu.memory_space<vmem>>, vector<16x192xf32>
    %c1_28 = arith.constant 1 : index
    %c0_29 = arith.constant 0 : index
    %c0_30 = arith.constant 0 : index
    %24 = vector.load %arg6[%c1_28, %c0_29, %c0_30] : memref<3x192x128xf32, #tpu.memory_space<vmem>>, vector<1x192x128xf32>
    %25 = vector.shape_cast %24 : vector<1x192x128xf32> to vector<192x128xf32>
    %cst_31 = arith.constant dense<0.000000e+00> : vector<16x128xf32>
    %26 = tpu.matmul %23, %25, %cst_31 {dimension_numbers = #tpu.dot_dimension_numbers<[1], [0], [0], [1], [0, 0, 1, 1], [], []>} : vector<16x192xf32>, vector<192x128xf32>, vector<16x128xf32> -> vector<16x128xf32>
    %27 = arith.addf %22, %26 : vector<16x128xf32>
    %c2 = arith.constant 2 : index
    %c0_32 = arith.constant 0 : index
    %28 = vector.load %arg11[%c2, %c0_32] : memref<18x192xf32, #tpu.memory_space<vmem>>, vector<16x192xf32>
    %c2_33 = arith.constant 2 : index
    %c0_34 = arith.constant 0 : index
    %c0_35 = arith.constant 0 : index
    %29 = vector.load %arg6[%c2_33, %c0_34, %c0_35] : memref<3x192x128xf32, #tpu.memory_space<vmem>>, vector<1x192x128xf32>
    %30 = vector.shape_cast %29 : vector<1x192x128xf32> to vector<192x128xf32>
    %cst_36 = arith.constant dense<0.000000e+00> : vector<16x128xf32>
    %31 = tpu.matmul %28, %30, %cst_36 {dimension_numbers = #tpu.dot_dimension_numbers<[1], [0], [0], [1], [0, 0, 1, 1], [], []>} : vector<16x192xf32>, vector<192x128xf32>, vector<16x128xf32> -> vector<16x128xf32>
    %32 = arith.addf %27, %31 : vector<16x128xf32>
    %c0_37 = arith.constant 0 : index
    %c0_38 = arith.constant 0 : index
    %33 = vector.load %arg7[%c0_37, %c0_38] : memref<1x128xf32, #tpu.memory_space<vmem>>, vector<1x128xf32>
    %34 = vector.broadcast %33 : vector<1x128xf32> to vector<16x128xf32>
    %35 = arith.addf %32, %34 : vector<16x128xf32>
    %cst_39 = arith.constant 0.000000e+00 : f32
    %36 = vector.broadcast %cst_39 : f32 to vector<16x128xf32>
    %37 = arith.cmpf oge, %35, %36 : vector<16x128xf32>
    %cst_40 = arith.constant 0.00999999977 : f32
    %38 = vector.broadcast %cst_40 : f32 to vector<16x128xf32>
    %39 = arith.mulf %38, %35 : vector<16x128xf32>
    %40 = arith.select %37, %35, %39 : vector<16x128xi1>, vector<16x128xf32>
    %cst_41 = arith.constant 0.000000e+00 : f32
    %41 = vector.broadcast %cst_41 : f32 to vector<1x128xf32>
    %c0_42 = arith.constant 0 : index
    %c0_43 = arith.constant 0 : index
    %42 = vector.load %arg12[%c0_42, %c0_43] : memref<18x128xf32, #tpu.memory_space<vmem>>, vector<1x128xf32>
    tpu.vector_store %arg12[%c0_42, %c0_43], %41 {strides = array<i32>} : memref<18x128xf32, #tpu.memory_space<vmem>>, vector<1x128xf32>,
    %cst_44 = arith.constant 0.000000e+00 : f32
    %43 = vector.broadcast %cst_44 : f32 to vector<1x128xf32>
    %c17_45 = arith.constant 17 : index
    %c0_46 = arith.constant 0 : index
    %44 = vector.load %arg12[%c17_45, %c0_46] : memref<18x128xf32, #tpu.memory_space<vmem>>, vector<1x128xf32>
    tpu.vector_store %arg12[%c17_45, %c0_46], %43 {strides = array<i32>} : memref<18x128xf32, #tpu.memory_space<vmem>>, vector<1x128xf32>,
    %c1_47 = arith.constant 1 : index
    %c0_48 = arith.constant 0 : index
    %45 = vector.load %arg12[%c1_47, %c0_48] : memref<18x128xf32, #tpu.memory_space<vmem>>, vector<16x128xf32>
    tpu.vector_store %arg12[%c1_47, %c0_48], %40 {strides = array<i32>} : memref<18x128xf32, #tpu.memory_space<vmem>>, vector<16x128xf32>,
    %cst_49 = arith.constant 0.000000e+00 : f32
    %46 = vector.broadcast %cst_49 : f32 to vector<16x128xf32>
    %c0_50 = arith.constant 0 : index
    %c0_51 = arith.constant 0 : index
    %47 = vector.load %arg12[%c0_50, %c0_51] : memref<18x128xf32, #tpu.memory_space<vmem>>, vector<16x128xf32>
    %c0_52 = arith.constant 0 : index
    %c0_53 = arith.constant 0 : index
    %c0_54 = arith.constant 0 : index
    %48 = vector.load %arg8[%c0_52, %c0_53, %c0_54] : memref<3x128x128xf32, #tpu.memory_space<vmem>>, vector<1x128x128xf32>
    %49 = vector.shape_cast %48 : vector<1x128x128xf32> to vector<128x128xf32>
    %cst_55 = arith.constant dense<0.000000e+00> : vector<16x128xf32>
    %50 = tpu.matmul %47, %49, %cst_55 {dimension_numbers = #tpu.dot_dimension_numbers<[1], [0], [0], [1], [0, 0, 1, 1], [], []>} : vector<16x128xf32>, vector<128x128xf32>, vector<16x128xf32> -> vector<16x128xf32>
    %51 = arith.addf %46, %50 : vector<16x128xf32>
    %c1_56 = arith.constant 1 : index
    %c0_57 = arith.constant 0 : index
    %52 = vector.load %arg12[%c1_56, %c0_57] : memref<18x128xf32, #tpu.memory_space<vmem>>, vector<16x128xf32>
    %c1_58 = arith.constant 1 : index
    %c0_59 = arith.constant 0 : index
    %c0_60 = arith.constant 0 : index
    %53 = vector.load %arg8[%c1_58, %c0_59, %c0_60] : memref<3x128x128xf32, #tpu.memory_space<vmem>>, vector<1x128x128xf32>
    %54 = vector.shape_cast %53 : vector<1x128x128xf32> to vector<128x128xf32>
    %cst_61 = arith.constant dense<0.000000e+00> : vector<16x128xf32>
    %55 = tpu.matmul %52, %54, %cst_61 {dimension_numbers = #tpu.dot_dimension_numbers<[1], [0], [0], [1], [0, 0, 1, 1], [], []>} : vector<16x128xf32>, vector<128x128xf32>, vector<16x128xf32> -> vector<16x128xf32>
    %56 = arith.addf %51, %55 : vector<16x128xf32>
    %c2_62 = arith.constant 2 : index
    %c0_63 = arith.constant 0 : index
    %57 = vector.load %arg12[%c2_62, %c0_63] : memref<18x128xf32, #tpu.memory_space<vmem>>, vector<16x128xf32>
    %c2_64 = arith.constant 2 : index
    %c0_65 = arith.constant 0 : index
    %c0_66 = arith.constant 0 : index
    %58 = vector.load %arg8[%c2_64, %c0_65, %c0_66] : memref<3x128x128xf32, #tpu.memory_space<vmem>>, vector<1x128x128xf32>
    %59 = vector.shape_cast %58 : vector<1x128x128xf32> to vector<128x128xf32>
    %cst_67 = arith.constant dense<0.000000e+00> : vector<16x128xf32>
    %60 = tpu.matmul %57, %59, %cst_67 {dimension_numbers = #tpu.dot_dimension_numbers<[1], [0], [0], [1], [0, 0, 1, 1], [], []>} : vector<16x128xf32>, vector<128x128xf32>, vector<16x128xf32> -> vector<16x128xf32>
    %61 = arith.addf %56, %60 : vector<16x128xf32>
    %c0_68 = arith.constant 0 : index
    %c0_69 = arith.constant 0 : index
    %62 = vector.load %arg9[%c0_68, %c0_69] : memref<1x128xf32, #tpu.memory_space<vmem>>, vector<1x128xf32>
    %63 = vector.broadcast %62 : vector<1x128xf32> to vector<16x128xf32>
    %64 = arith.addf %61, %63 : vector<16x128xf32>
    %cst_70 = arith.constant 0.000000e+00 : f32
    %65 = vector.broadcast %cst_70 : f32 to vector<16x128xf32>
    %66 = arith.cmpf oge, %64, %65 : vector<16x128xf32>
    %cst_71 = arith.constant 0.00999999977 : f32
    %67 = vector.broadcast %cst_71 : f32 to vector<16x128xf32>
    %68 = arith.mulf %67, %64 : vector<16x128xf32>
    %69 = arith.select %66, %64, %68 : vector<16x128xi1>, vector<16x128xf32>
    %c0_72 = arith.constant 0 : index
    %c0_73 = arith.constant 0 : index
    %c0_74 = arith.constant 0 : index
    %70 = vector.load %arg10[%c0_72, %c0_73, %c0_74] : memref<1x16x128xf32, #tpu.memory_space<vmem>>, vector<1x16x128xf32>
    %71 = vector.shape_cast %70 : vector<1x16x128xf32> to vector<16x128xf32>
    %72 = vector.shape_cast %69 : vector<16x128xf32> to vector<1x16x128xf32>
    tpu.vector_store %arg10[%c0_72, %c0_73, %c0_74], %72 {strides = array<i32>} : memref<1x16x128xf32, #tpu.memory_space<vmem>>, vector<1x16x128xf32>,
    return
  }
  func.func @transform_0(%arg0: i32) -> (i32, i32, i32) {
    %c0_i32 = arith.constant 0 : i32
    %c0_i32_0 = arith.constant 0 : i32
    %c0_i32_1 = arith.constant 0 : i32
    return %arg0, %c0_i32, %c0_i32_0 : i32, i32, i32
  }
  func.func @transform_1(%arg0: i32) -> (i32, i32, i32) {
    %c0_i32 = arith.constant 0 : i32
    %c0_i32_0 = arith.constant 0 : i32
    %c0_i32_1 = arith.constant 0 : i32
    return %arg0, %c0_i32, %c0_i32_0 : i32, i32, i32
  }
  func.func @transform_2(%arg0: i32) -> (i32, i32) {
    %c0_i32 = arith.constant 0 : i32
    %c0_i32_0 = arith.constant 0 : i32
    %c0_i32_1 = arith.constant 0 : i32
    return %c0_i32, %c0_i32_0 : i32, i32
  }
  func.func @transform_3(%arg0: i32) -> (i32, i32) {
    %c0_i32 = arith.constant 0 : i32
    %c0_i32_0 = arith.constant 0 : i32
    %c0_i32_1 = arith.constant 0 : i32
    return %c0_i32, %c0_i32_0 : i32, i32
  }
  func.func @transform_4(%arg0: i32) -> (i32, i32) {
    %c0_i32 = arith.constant 0 : i32
    %c0_i32_0 = arith.constant 0 : i32
    %c0_i32_1 = arith.constant 0 : i32
    return %c0_i32, %c0_i32_0 : i32, i32
  }
  func.func @transform_5(%arg0: i32) -> (i32, i32, i32) {
    %c0_i32 = arith.constant 0 : i32
    %c0_i32_0 = arith.constant 0 : i32
    %c0_i32_1 = arith.constant 0 : i32
    %c0_i32_2 = arith.constant 0 : i32
    return %c0_i32, %c0_i32_0, %c0_i32_1 : i32, i32, i32
  }
  func.func @transform_6(%arg0: i32) -> (i32, i32) {
    %c0_i32 = arith.constant 0 : i32
    %c0_i32_0 = arith.constant 0 : i32
    %c0_i32_1 = arith.constant 0 : i32
    return %c0_i32, %c0_i32_0 : i32, i32
  }
  func.func @transform_7(%arg0: i32) -> (i32, i32, i32) {
    %c0_i32 = arith.constant 0 : i32
    %c0_i32_0 = arith.constant 0 : i32
    %c0_i32_1 = arith.constant 0 : i32
    %c0_i32_2 = arith.constant 0 : i32
    return %c0_i32, %c0_i32_0, %c0_i32_1 : i32, i32, i32
  }
  func.func @transform_8(%arg0: i32) -> (i32, i32) {
    %c0_i32 = arith.constant 0 : i32
    %c0_i32_0 = arith.constant 0 : i32
    %c0_i32_1 = arith.constant 0 : i32
    return %c0_i32, %c0_i32_0 : i32, i32
  }
  func.func @transform_9(%arg0: i32) -> (i32, i32, i32) {
    %c0_i32 = arith.constant 0 : i32
    %c0_i32_0 = arith.constant 0 : i32
    %c0_i32_1 = arith.constant 0 : i32
    return %arg0, %c0_i32, %c0_i32_0 : i32, i32, i32
  }
}

</mosaic_0001>

<llo_original>
// kernel: tile.23
$region0: #{tile.23}
  #allocation0 [shape = 's32[1]{0}', space=sflag, size = 0x4, scoped, tag = 'scoped memory for tile.23']
  %s0 = inlined_call_operand.vmem [shape: f32[8], index: 0, kind: input, shape index: {}]
  %s1 = inlined_call_operand.vmem [shape: f32[16,8], index: 1, kind: output, shape index: {}]
  // Predicated region
  $region2: #{tile.23} parent=0 // pred_check
    _
  $region3: #{tile.23} parent=0 // pred_check_branch
    %3 = sbr.rel (0) target = $region5
  $region4: #{tile.23} parent=0 // pred_region
    _
  $region5: #{tile.23} parent=0 // pred_fallthru
    _
  %v4 = vld [vmem:[%s0] ss:$0 sm:$0xff]
  %5 = vst [vmem:[%s1] sm:$0xff] %v4
  %s6 = scalar_lea.vmem %s1, 8
  %7 = vst [vmem:[%s6] sm:$0xff] %v4

// kernel: tile.24
$region0: #{tile.24}
  %s0 = inlined_call_operand.vmem [shape: f32[16,8], index: 0, kind: input, shape index: {}]
  %s1 = inlined_call_operand.vmem [shape: f32[1,128], index: 1, kind: output, shape index: {}]
  $region1: #{tile.24} parent=0
    #allocation0 [shape = 'u8[4096]{0}', space=vmem, size = 0x1000, scoped, tag = 'scoped mem for output reshape']
    %v2 = vld [vmem:[%s0] sm:$0x1]
    %vm3 = vcmask 64512
    %4 = vst.msk [vmem:[#allocation0] sm:$0x1] %vm3, %v2
    %s5 = scalar_lea.vmem %s0, 15
    %v6 = vld [vmem:[%s5] sm:$0x1]
    %7 = vrot.lane.b32.xlu0 %v6, 120
    %v8 = vpop.permute.xlu0 %7
    %vm9 = vcmask 1048512
    %10 = vst.msk [vmem:[#allocation0] sm:$0x1] %vm9, %v8
    %s11 = scalar_lea.vmem %s0, 14
    %v12 = vld [vmem:[%s11] sm:$0x1]
    %13 = vrot.lane.b32.xlu0 %v12, 112
    %v14 = vpop.permute.xlu0 %13
    %vm15 = vcmask 982912
    %16 = vst.msk [vmem:[#allocation0] sm:$0x1] %vm15, %v14
    %s17 = scalar_lea.vmem %s0, 13
    %v18 = vld [vmem:[%s17] sm:$0x1]
    %19 = vrot.lane.b32.xlu0 %v18, 104
    %v20 = vpop.permute.xlu0 %19
    %vm21 = vcmask 917312
    %22 = vst.msk [vmem:[#allocation0] sm:$0x1] %vm21, %v20
    %s23 = scalar_lea.vmem %s0, 12
    %v24 = vld [vmem:[%s23] sm:$0x1]
    %25 = vrot.lane.b32.xlu0 %v24, 96
    %v26 = vpop.permute.xlu0 %25
    %vm27 = vcmask 851712
    %28 = vst.msk [vmem:[#allocation0] sm:$0x1] %vm27, %v26
    %s29 = scalar_lea.vmem %s0, 11
    %v30 = vld [vmem:[%s29] sm:$0x1]
    %31 = vrot.lane.b32.xlu0 %v30, 88
    %v32 = vpop.permute.xlu0 %31
    %vm33 = vcmask 786112
    %34 = vst.msk [vmem:[#allocation0] sm:$0x1] %vm33, %v32
    %s35 = scalar_lea.vmem %s0, 10
    %v36 = vld [vmem:[%s35] sm:$0x1]
    %37 = vrot.lane.b32.xlu0 %v36, 80
    %v38 = vpop.permute.xlu0 %37
    %vm39 = vcmask 720512
    %40 = vst.msk [vmem:[#allocation0] sm:$0x1] %vm39, %v38
    %s41 = scalar_lea.vmem %s0, 9
    %v42 = vld [vmem:[%s41] sm:$0x1]
    %43 = vrot.lane.b32.xlu0 %v42, 72
    %v44 = vpop.permute.xlu0 %43
    %vm45 = vcmask 654912
    %46 = vst.msk [vmem:[#allocation0] sm:$0x1] %vm45, %v44
    %s47 = scalar_lea.vmem %s0, 8
    %v48 = vld [vmem:[%s47] sm:$0x1]
    %49 = vrot.lane.b32.xlu0 %v48, 64
    %v50 = vpop.permute.xlu0 %49
    %vm51 = vcmask 589312
    %52 = vst.msk [vmem:[#allocation0] sm:$0x1] %vm51, %v50
    %s53 = scalar_lea.vmem %s0, 7
    %v54 = vld [vmem:[%s53] sm:$0x1]
    %55 = vrot.lane.b32.xlu0 %v54, 56
    %v56 = vpop.permute.xlu0 %55
    %vm57 = vcmask 523712
    %58 = vst.msk [vmem:[#allocation0] sm:$0x1] %vm57, %v56
    %s59 = scalar_lea.vmem %s0, 6
    %v60 = vld [vmem:[%s59] sm:$0x1]
    %61 = vrot.lane.b32.xlu0 %v60, 48
    %v62 = vpop.permute.xlu0 %61
    %vm63 = vcmask 458112
    %64 = vst.msk [vmem:[#allocation0] sm:$0x1] %vm63, %v62
    %s65 = scalar_lea.vmem %s0, 5
    %v66 = vld [vmem:[%s65] sm:$0x1]
    %67 = vrot.lane.b32.xlu0 %v66, 40
    %v68 = vpop.permute.xlu0 %67
    %vm69 = vcmask 392512
    %70 = vst.msk [vmem:[#allocation0] sm:$0x1] %vm69, %v68
    %s71 = scalar_lea.vmem %s0, 4
    %v72 = vld [vmem:[%s71] sm:$0x1]
    %73 = vrot.lane.b32.xlu0 %v72, 32
    %v74 = vpop.permute.xlu0 %73
    %vm75 = vcmask 326912
    %76 = vst.msk [vmem:[#allocation0] sm:$0x1] %vm75, %v74
    %s77 = scalar_lea.vmem %s0, 3
    %v78 = vld [vmem:[%s77] sm:$0x1]
    %79 = vrot.lane.b32.xlu0 %v78, 24
    %v80 = vpop.permute.xlu0 %79
    %vm81 = vcmask 261312
    %82 = vst.msk [vmem:[#allocation0] sm:$0x1] %vm81, %v80
    %s83 = scalar_lea.vmem %s0, 2
    %v84 = vld [vmem:[%s83] sm:$0x1]
    %85 = vrot.lane.b32.xlu0 %v84, 16
    %v86 = vpop.permute.xlu0 %85
    %vm87 = vcmask 195712
    %88 = vst.msk [vmem:[#allocation0] sm:$0x1] %vm87, %v86
    %s89 = scalar_lea.vmem %s0, 1
    %v90 = vld [vmem:[%s89] sm:$0x1]
    %91 = vrot.lane.b32.xlu0 %v90, 8
    %v92 = vpop.permute.xlu0 %91
    %vm93 = vcmask 130112
    %94 = vst.msk [vmem:[#allocation0] sm:$0x1] %vm93, %v92
    %s96 = sshllo.u32 0, 1
    %v98 = vld [vmem:[#allocation0] sm:%s96]
    %s99 = sshllo.u32 0, 1
    %100 = vst [vmem:[%s1] sm:%s99] %v98

// kernel: up_block_forward.1
$region0: #{up_block_forward.1}
  #allocation0 [shape = 'u32[]', space=smem, size = 0x4, offset = 0x4, fixed_abs, tag = 'smem constant byte address 0x4 - core index']
  #allocation1 [shape = 'u32[144,128]{1,0:T(1,128)}', space=vmem, size = 0x12000, scoped, tag = 'internal scratch']
  #allocation2 [shape = 'f32[18,192]{1,0:T(8,128)}', space=vmem, size = 0x6000, scoped, tag = 'scratch operand']
  #allocation3 [shape = 'f32[18,128]{1,0:T(8,128)}', space=vmem, size = 0x3000, scoped, tag = 'scratch operand']
  %s0 = inlined_call_operand.vmem [shape: f32[2,8,64], index: 0, kind: input, shape index: {}]
  %s1 = inlined_call_operand.vmem [shape: f32[2,16,64], index: 1, kind: input, shape index: {}]
  %s2 = inlined_call_operand.vmem [shape: f32[16,8], index: 2, kind: input, shape index: {}]
  %s3 = inlined_call_operand.vmem [shape: f32[64,128], index: 3, kind: input, shape index: {}]
  %s4 = inlined_call_operand.vmem [shape: f32[1,128], index: 4, kind: input, shape index: {}]
  %s5 = inlined_call_operand.vmem [shape: f32[3,192,128], index: 5, kind: input, shape index: {}]
  %s6 = inlined_call_operand.vmem [shape: f32[1,128], index: 6, kind: input, shape index: {}]
  %s7 = inlined_call_operand.vmem [shape: f32[3,128,128], index: 7, kind: input, shape index: {}]
  %s8 = inlined_call_operand.vmem [shape: f32[1,128], index: 8, kind: input, shape index: {}]
  %s9 = inlined_call_operand.vmem [shape: f32[2,16,128], index: 9, kind: output, shape index: {}]
  %s10 = sld [smem:[#allocation0]]
  $region69: #{up_block_forward.1} parent=0
    _
  %s12 = ssub.s32 1, %s10
  %s13 = scalar_select 0, %s12, %s10
  loop: start=0, step=1, limit=4
  $region2: #{up_block_forward.1} parent=0 // loop_pre_header
    _
  $region3: #{up_block_forward.1} parent=0 // loop_header
    %s15 = sphi 0, %s19
    %p16 = scmp.ge.s32.totalorder %s15, 4
    %s25 = sphi 0, %s27
    %s28 = sphi 0, %s25
    %s29 = sphi 0, %s28
    %s45 = sphi 0, %s29
    %s51 = sphi 0, %s53
    %s54 = sphi 0, %s51
    %s55 = sphi 0, %s54
    %s71 = sphi 0, %s55
    %s75 = sphi 0, %s75
    %s77 = sphi 0, %s75
    %s78 = sphi 0, %s77
    %s92 = sphi 0, %s78
    %s96 = sphi 0, %s96
    %s98 = sphi 0, %s96
    %s99 = sphi 0, %s98
    %s113 = sphi 0, %s99
    %s117 = sphi 0, %s117
    %s119 = sphi 0, %s117
    %s120 = sphi 0, %s119
    %s134 = sphi 0, %s120
    %s138 = sphi 0, %s138
    %s140 = sphi 0, %s138
    %s141 = sphi 0, %s140
    %s155 = sphi 0, %s141
    %s159 = sphi 0, %s159
    %s161 = sphi 0, %s159
    %s162 = sphi 0, %s161
    %s176 = sphi 0, %s162
    %s180 = sphi 0, %s180
    %s182 = sphi 0, %s180
    %s183 = sphi 0, %s182
    %s197 = sphi 0, %s183
    %s201 = sphi 0, %s201
    %s203 = sphi 0, %s201
    %s204 = sphi 0, %s203
    %s218 = sphi 0, %s204
    %s224 = sphi 0, %s226
    %s227 = sphi 0, %s224
    %s228 = sphi 0, %s227
    %s244 = sphi 0, %s228
  $region4: #{up_block_forward.1} parent=0 // loop_header_branch
    %18 = sbr.rel (%p16) target = $region8
  $region5: #{up_block_forward.1} parent=0 // loop_body
    %s20 = ssub.s32 %s15, 1
    %s21 = ssub.s32 %s15, 2
    %s22 = sadd.s32 %s15, 1
    %s23 = ssub.s32 %s15, %s22
    %p24 = scmp.eq.s32.totalorder %s23, 0
    %s26 = sadd.s32 %s25, 1
    %s27 = scalar_select %p24, %s25, %s26
    %p30 = pneg %p24
    %p31 = scmp.eq.s32.totalorder %s15, 1
    %p32 = por %p30, %p31
    %p33 = scmp.ne.s32.totalorder %s25, %s28
    %p34 = scmp.eq.s32.totalorder %s15, 0
    %p35 = por %p33, %p34
    %p36 = scmp.ne.s32.totalorder %s25, %s28
    %p37 = scmp.eq.s32.totalorder %s20, 1
    %p38 = por %p36, %p37
    %p39 = scmp.ne.s32.totalorder %s28, %s29
    %p40 = scmp.eq.s32.totalorder %s20, 0
    %p41 = por %p39, %p40
    %p42 = scmp.ne.s32.totalorder %s28, %s29
    %p43 = scmp.eq.s32.totalorder %s21, 1
    %p44 = por %p42, %p43
    %p46 = scmp.ne.s32.totalorder %s29, %s45
    %p47 = scmp.eq.s32.totalorder %s21, 0
    %p48 = por %p46, %p47
    %s49 = ssub.s32 %s15, %s22
    %p50 = scmp.eq.s32.totalorder %s49, 0
    %s52 = sadd.s32 %s51, 1
    %s53 = scalar_select %p50, %s51, %s52
    %p56 = pneg %p50
    %p57 = scmp.eq.s32.totalorder %s15, 1
    %p58 = por %p56, %p57
    %p59 = scmp.ne.s32.totalorder %s51, %s54
    %p60 = scmp.eq.s32.totalorder %s15, 0
    %p61 = por %p59, %p60
    %p62 = scmp.ne.s32.totalorder %s51, %s54
    %p63 = scmp.eq.s32.totalorder %s20, 1
    %p64 = por %p62, %p63
    %p65 = scmp.ne.s32.totalorder %s54, %s55
    %p66 = scmp.eq.s32.totalorder %s20, 0
    %p67 = por %p65, %p66
    %p68 = scmp.ne.s32.totalorder %s54, %s55
    %p69 = scmp.eq.s32.totalorder %s21, 1
    %p70 = por %p68, %p69
    %p72 = scmp.ne.s32.totalorder %s55, %s71
    %p73 = scmp.eq.s32.totalorder %s21, 0
    %p74 = por %p72, %p73
    %s76 = sadd.s32 %s75, 1
    %p79 = scmp.eq.s32.totalorder %s15, 1
    %p80 = scmp.ne.s32.totalorder %s75, %s77
    %p81 = scmp.eq.s32.totalorder %s15, 0
    %p82 = por %p80, %p81
    %p83 = scmp.ne.s32.totalorder %s75, %s77
    %p84 = scmp.eq.s32.totalorder %s20, 1
    %p85 = por %p83, %p84
    %p86 = scmp.ne.s32.totalorder %s77, %s78
    %p87 = scmp.eq.s32.totalorder %s20, 0
    %p88 = por %p86, %p87
    %p89 = scmp.ne.s32.totalorder %s77, %s78
    %p90 = scmp.eq.s32.totalorder %s21, 1
    %p91 = por %p89, %p90
    %p93 = scmp.ne.s32.totalorder %s78, %s92
    %p94 = scmp.eq.s32.totalorder %s21, 0
    %p95 = por %p93, %p94
    %s97 = sadd.s32 %s96, 1
    %p100 = scmp.eq.s32.totalorder %s15, 1
    %p101 = scmp.ne.s32.totalorder %s96, %s98
    %p102 = scmp.eq.s32.totalorder %s15, 0
    %p103 = por %p101, %p102
    %p104 = scmp.ne.s32.totalorder %s96, %s98
    %p105 = scmp.eq.s32.totalorder %s20, 1
    %p106 = por %p104, %p105
    %p107 = scmp.ne.s32.totalorder %s98, %s99
    %p108 = scmp.eq.s32.totalorder %s20, 0
    %p109 = por %p107, %p108
    %p110 = scmp.ne.s32.totalorder %s98, %s99
    %p111 = scmp.eq.s32.totalorder %s21, 1
    %p112 = por %p110, %p111
    %p114 = scmp.ne.s32.totalorder %s99, %s113
    %p115 = scmp.eq.s32.totalorder %s21, 0
    %p116 = por %p114, %p115
    %s118 = sadd.s32 %s117, 1
    %p121 = scmp.eq.s32.totalorder %s15, 1
    %p122 = scmp.ne.s32.totalorder %s117, %s119
    %p123 = scmp.eq.s32.totalorder %s15, 0
    %p124 = por %p122, %p123
    %p125 = scmp.ne.s32.totalorder %s117, %s119
    %p126 = scmp.eq.s32.totalorder %s20, 1
    %p127 = por %p125, %p126
    %p128 = scmp.ne.s32.totalorder %s119, %s120
    %p129 = scmp.eq.s32.totalorder %s20, 0
    %p130 = por %p128, %p129
    %p131 = scmp.ne.s32.totalorder %s119, %s120
    %p132 = scmp.eq.s32.totalorder %s21, 1
    %p133 = por %p131, %p132
    %p135 = scmp.ne.s32.totalorder %s120, %s134
    %p136 = scmp.eq.s32.totalorder %s21, 0
    %p137 = por %p135, %p136
    %s139 = sadd.s32 %s138, 1
    %p142 = scmp.eq.s32.totalorder %s15, 1
    %p143 = scmp.ne.s32.totalorder %s138, %s140
    %p144 = scmp.eq.s32.totalorder %s15, 0
    %p145 = por %p143, %p144
    %p146 = scmp.ne.s32.totalorder %s138, %s140
    %p147 = scmp.eq.s32.totalorder %s20, 1
    %p148 = por %p146, %p147
    %p149 = scmp.ne.s32.totalorder %s140, %s141
    %p150 = scmp.eq.s32.totalorder %s20, 0
    %p151 = por %p149, %p150
    %p152 = scmp.ne.s32.totalorder %s140, %s141
    %p153 = scmp.eq.s32.totalorder %s21, 1
    %p154 = por %p152, %p153
    %p156 = scmp.ne.s32.totalorder %s141, %s155
    %p157 = scmp.eq.s32.totalorder %s21, 0
    %p158 = por %p156, %p157
    %s160 = sadd.s32 %s159, 1
    %p163 = scmp.eq.s32.totalorder %s15, 1
    %p164 = scmp.ne.s32.totalorder %s159, %s161
    %p165 = scmp.eq.s32.totalorder %s15, 0
    %p166 = por %p164, %p165
    %p167 = scmp.ne.s32.totalorder %s159, %s161
    %p168 = scmp.eq.s32.totalorder %s20, 1
    %p169 = por %p167, %p168
    %p170 = scmp.ne.s32.totalorder %s161, %s162
    %p171 = scmp.eq.s32.totalorder %s20, 0
    %p172 = por %p170, %p171
    %p173 = scmp.ne.s32.totalorder %s161, %s162
    %p174 = scmp.eq.s32.totalorder %s21, 1
    %p175 = por %p173, %p174
    %p177 = scmp.ne.s32.totalorder %s162, %s176
    %p178 = scmp.eq.s32.totalorder %s21, 0
    %p179 = por %p177, %p178
    %s181 = sadd.s32 %s180, 1
    %p184 = scmp.eq.s32.totalorder %s15, 1
    %p185 = scmp.ne.s32.totalorder %s180, %s182
    %p186 = scmp.eq.s32.totalorder %s15, 0
    %p187 = por %p185, %p186
    %p188 = scmp.ne.s32.totalorder %s180, %s182
    %p189 = scmp.eq.s32.totalorder %s20, 1
    %p190 = por %p188, %p189
    %p191 = scmp.ne.s32.totalorder %s182, %s183
    %p192 = scmp.eq.s32.totalorder %s20, 0
    %p193 = por %p191, %p192
    %p194 = scmp.ne.s32.totalorder %s182, %s183
    %p195 = scmp.eq.s32.totalorder %s21, 1
    %p196 = por %p194, %p195
    %p198 = scmp.ne.s32.totalorder %s183, %s197
    %p199 = scmp.eq.s32.totalorder %s21, 0
    %p200 = por %p198, %p199
    %s202 = sadd.s32 %s201, 1
    %p205 = scmp.eq.s32.totalorder %s15, 1
    %p206 = scmp.ne.s32.totalorder %s201, %s203
    %p207 = scmp.eq.s32.totalorder %s15, 0
    %p208 = por %p206, %p207
    %p209 = scmp.ne.s32.totalorder %s201, %s203
    %p210 = scmp.eq.s32.totalorder %s20, 1
    %p211 = por %p209, %p210
    %p212 = scmp.ne.s32.totalorder %s203, %s204
    %p213 = scmp.eq.s32.totalorder %s20, 0
    %p214 = por %p212, %p213
    %p215 = scmp.ne.s32.totalorder %s203, %s204
    %p216 = scmp.eq.s32.totalorder %s21, 1
    %p217 = por %p215, %p216
    %p219 = scmp.ne.s32.totalorder %s204, %s218
    %p220 = scmp.eq.s32.totalorder %s21, 0
    %p221 = por %p219, %p220
    %s222 = ssub.s32 %s15, %s22
    %p223 = scmp.eq.s32.totalorder %s222, 0
    %s225 = sadd.s32 %s224, 1
    %s226 = scalar_select %p223, %s224, %s225
    %p229 = pneg %p223
    %p230 = scmp.eq.s32.totalorder %s15, 1
    %p231 = por %p229, %p230
    %p232 = scmp.ne.s32.totalorder %s224, %s227
    %p233 = scmp.eq.s32.totalorder %s15, 0
    %p234 = por %p232, %p233
    %p235 = scmp.ne.s32.totalorder %s224, %s227
    %p236 = scmp.eq.s32.totalorder %s20, 1
    %p237 = por %p235, %p236
    %p238 = scmp.ne.s32.totalorder %s227, %s228
    %p239 = scmp.eq.s32.totalorder %s20, 0
    %p240 = por %p238, %p239
    %p241 = scmp.ne.s32.totalorder %s227, %s228
    %p242 = scmp.eq.s32.totalorder %s21, 1
    %p243 = por %p241, %p242
    %p245 = scmp.ne.s32.totalorder %s228, %s244
    %p246 = scmp.eq.s32.totalorder %s21, 0
    %p247 = por %p245, %p246
    %p248 = scmp.le.s32.totalorder 1, %s15
    %p249 = scmp.lt.s32.totalorder %s15, 3
    %p250 = pnand %p248, %p249
    %p251 = pneg %p250
    // Predicated region
    $region9: #{up_block_forward.1} parent=5 // pred_check
      _
    $region10: #{up_block_forward.1} parent=5 // pred_check_branch
      %253 = sbr.rel (%p250) target = $region12
    $region11: #{up_block_forward.1} parent=5 // pred_region
      %s254 = ssub.s32 %s15, 1
      // Predicated region
      $region13: #{up_block_forward.1} parent=11 // pred_check
        %p255 = pneg %p88
      $region14: #{up_block_forward.1} parent=11 // pred_check_branch
        %257 = sbr.rel (%p255) target = $region16
      $region15: #{up_block_forward.1} parent=11 // pred_region
        _
      $region16: #{up_block_forward.1} parent=11 // pred_fallthru
        _
      // Predicated region
      $region17: #{up_block_forward.1} parent=11 // pred_check
        %p258 = pneg %p109
      $region18: #{up_block_forward.1} parent=11 // pred_check_branch
        %260 = sbr.rel (%p258) target = $region20
      $region19: #{up_block_forward.1} parent=11 // pred_region
        _
      $region20: #{up_block_forward.1} parent=11 // pred_fallthru
        _
      // Predicated region
      $region21: #{up_block_forward.1} parent=11 // pred_check
        %p261 = pneg %p130
      $region22: #{up_block_forward.1} parent=11 // pred_check_branch
        %263 = sbr.rel (%p261) target = $region24
      $region23: #{up_block_forward.1} parent=11 // pred_region
        _
      $region24: #{up_block_forward.1} parent=11 // pred_fallthru
        _
      // Predicated region
      $region25: #{up_block_forward.1} parent=11 // pred_check
        %p264 = pneg %p151
      $region26: #{up_block_forward.1} parent=11 // pred_check_branch
        %266 = sbr.rel (%p264) target = $region28
      $region27: #{up_block_forward.1} parent=11 // pred_region
        _
      $region28: #{up_block_forward.1} parent=11 // pred_fallthru
        _
      // Predicated region
      $region29: #{up_block_forward.1} parent=11 // pred_check
        %p267 = pneg %p172
      $region30: #{up_block_forward.1} parent=11 // pred_check_branch
        %269 = sbr.rel (%p267) target = $region32
      $region31: #{up_block_forward.1} parent=11 // pred_region
        _
      $region32: #{up_block_forward.1} parent=11 // pred_fallthru
        _
      // Predicated region
      $region33: #{up_block_forward.1} parent=11 // pred_check
        %p270 = pneg %p193
      $region34: #{up_block_forward.1} parent=11 // pred_check_branch
        %272 = sbr.rel (%p270) target = $region36
      $region35: #{up_block_forward.1} parent=11 // pred_region
        _
      $region36: #{up_block_forward.1} parent=11 // pred_fallthru
        _
      // Predicated region
      $region37: #{up_block_forward.1} parent=11 // pred_check
        %p273 = pneg %p214
      $region38: #{up_block_forward.1} parent=11 // pred_check_branch
        %275 = sbr.rel (%p273) target = $region40
      $region39: #{up_block_forward.1} parent=11 // pred_region
        _
      $region40: #{up_block_forward.1} parent=11 // pred_fallthru
        _
    $region12: #{up_block_forward.1} parent=5 // pred_fallthru
      _
    %p276 = scmp.lt.s32.totalorder %s15, 2
    // Predicated region
    $region41: #{up_block_forward.1} parent=5 // pred_check
      %p277 = pneg %p276
    $region42: #{up_block_forward.1} parent=5 // pred_check_branch
      %279 = sbr.rel (%p277) target = $region44
    $region43: #{up_block_forward.1} parent=5 // pred_region
      // Predicated region
      $region45: #{up_block_forward.1} parent=43 // pred_check
        %p280 = pneg %p35
      $region46: #{up_block_forward.1} parent=43 // pred_check_branch
        %282 = sbr.rel (%p280) target = $region48
      $region47: #{up_block_forward.1} parent=43 // pred_region
        %p283 = scmp.lt.s32.totalorder %s15, 1
        %s284 = scalar_select %p283, %s15, 1
        %s285 = smul.addr %s284, 8
        %s286 = scalar_lea.vmem %s0, %s285
      $region48: #{up_block_forward.1} parent=43 // pred_fallthru
        _
      // Predicated region
      $region49: #{up_block_forward.1} parent=43 // pred_check
        %p287 = pneg %p61
      $region50: #{up_block_forward.1} parent=43 // pred_check_branch
        %289 = sbr.rel (%p287) target = $region52
      $region51: #{up_block_forward.1} parent=43 // pred_region
        %p290 = scmp.lt.s32.totalorder %s15, 1
        %s291 = scalar_select %p290, %s15, 1
        %s292 = smul.addr %s291, 2
        %s293 = smul.addr %s292, 8
        %s294 = scalar_lea.vmem %s1, %s293
      $region52: #{up_block_forward.1} parent=43 // pred_fallthru
        _
    $region44: #{up_block_forward.1} parent=5 // pred_fallthru
      _
    %p295 = scmp.le.s32.totalorder 1, %s15
    %p296 = scmp.lt.s32.totalorder %s15, 3
    %p297 = pnand %p295, %p296
    %p298 = pneg %p297
    // Predicated region
    $region53: #{up_block_forward.1} parent=5 // pred_check
      _
    $region54: #{up_block_forward.1} parent=5 // pred_check_branch
      %300 = sbr.rel (%p297) target = $region56
    $region55: #{up_block_forward.1} parent=5 // pred_region
      %s301 = ssub.s32 %s15, 1
      %p302 = scmp.lt.s32.totalorder %s20, 1
      %s303 = scalar_select %p302, %s20, 1
      %s304 = smul.addr %s303, 8
      %s305 = scalar_lea.vmem %s0, %s304
      %p306 = pneg %p41
      %p307 = pneg %p38
      %p308 = scmp.lt.s32.totalorder %s20, 1
      %s309 = scalar_select %p308, %s20, 1
      %s310 = smul.addr %s309, 2
      %s311 = smul.addr %s310, 8
      %s312 = scalar_lea.vmem %s1, %s311
      %p313 = pneg %p67
      %p314 = pneg %p64
      %p315 = pneg %p88
      %p316 = pneg %p85
      %p317 = pneg %p109
      %p318 = pneg %p106
      %p319 = pneg %p130
      %p320 = pneg %p127
      %p321 = pneg %p151
      %p322 = pneg %p148
      %p323 = pneg %p172
      %p324 = pneg %p169
      %p325 = pneg %p193
      %p326 = pneg %p190
      %p327 = pneg %p214
      %p328 = pneg %p211
      %p329 = pneg %p240
      %p330 = pneg %p237
      %p331 = scmp.lt.s32.totalorder %s20, 1
      %s332 = scalar_select %p331, %s20, 1
      %s333 = smul.addr %s332, 2
      %s334 = smul.addr %s333, 8
      %s335 = scalar_lea.vmem %s9, %s334
      %p336 = scmp.lt.s32.totalorder %s20, 1
      %s337 = scalar_select %p336, %s20, 1
      %s338 = smul.addr %s337, 8
      %s339 = scalar_lea.vmem %s0, %s338
      %p340 = scmp.lt.s32.totalorder %s20, 1
      %s341 = scalar_select %p340, %s20, 1
      %s342 = smul.addr %s341, 2
      %s343 = smul.addr %s342, 8
      %s344 = scalar_lea.vmem %s1, %s343
      %p345 = scmp.lt.s32.totalorder %s20, 1
      %s346 = scalar_select %p345, %s20, 1
      %s347 = smul.addr %s346, 2
      %s348 = smul.addr %s347, 8
      %s349 = scalar_lea.vmem %s9, %s348
      %v350 = vld [vmem:[%s2] sm:$0xff]
      %v351 = vld [vmem:[%s2 + $0x8] sm:$0xff]
      %v352 = vld [vmem:[%s339] sm:$0xff]
      %vm353 = vcmask 64512
      %v355 = vsel %vm353, %v350, 0
      %v358 = vsel %vm353, %v351, 0
      %360 = vmatprep.subr.mxu0 0.0
      %361 = vmatpush1.msra.mxu0 %v352
      %362 = vmatprep.subr.mxu0 0.0
      %363 = vmatpush1.msra.mxu0 0.0
      %364 = vmatprep.subr.mxu0 0.0
      %365 = vmatpush1.msra.mxu0 0.0
      %366 = vmatprep.subr.mxu0 0.0
      %367 = vmatpush1.msra.mxu0 0.0
      %368 = vmatprep.subr.mxu0 0.0
      %369 = vmatpush1.msra.mxu0 0.0
      %370 = vmatprep.subr.mxu0 0.0
      %371 = vmatpush1.msra.mxu0 0.0
      %372 = vmatprep.subr.mxu0 0.0
      %373 = vmatpush1.msra.mxu0 0.0
      %374 = vmatprep.subr.mxu0 0.0
      %375 = vmatpush1.msra.mxu0 0.0
      %376 = vmatprep.subr.mxu0 0.0
      %377 = vmatpush1.msra.mxu0 0.0
      %378 = vmatprep.subr.mxu0 0.0
      %379 = vmatpush1.msra.mxu0 0.0
      %380 = vmatprep.subr.mxu0 0.0
      %381 = vmatpush1.msra.mxu0 0.0
      %382 = vmatprep.subr.mxu0 0.0
      %383 = vmatpush1.msra.mxu0 0.0
      %384 = vmatprep.subr.mxu0 0.0
      %385 = vmatpush1.msra.mxu0 0.0
      %386 = vmatprep.subr.mxu0 0.0
      %387 = vmatpush1.msra.mxu0 0.0
      %388 = vmatprep.subr.mxu0 0.0
      %389 = vmatpush1.msra.mxu0 0.0
      %390 = vmatprep.subr.mxu0 0.0
      %391 = vmatpush1.msra.mxu0 0.0
      %392 = vmatprep.subr.mxu0 0.0
      %393 = vmatpush1.msra.mxu0 0.0
      %394 = vmatprep.subr.mxu0 0.0
      %395 = vmatpush1.msra.mxu0 0.0
      %396 = vmatprep.subr.mxu0 0.0
      %397 = vmatpush1.msra.mxu0 0.0
      %398 = vmatprep.subr.mxu0 0.0
      %399 = vmatpush1.msra.mxu0 0.0
      %400 = vmatprep.subr.mxu0 0.0
      %401 = vmatpush1.msra.mxu0 0.0
      %402 = vmatprep.subr.mxu0 0.0
      %403 = vmatpush1.msra.mxu0 0.0
      %404 = vmatprep.subr.mxu0 0.0
      %405 = vmatpush1.msra.mxu0 0.0
      %406 = vmatprep.subr.mxu0 0.0
      %407 = vmatpush1.msra.mxu0 0.0
      %408 = vmatprep.subr.mxu0 0.0
      %409 = vmatpush1.msra.mxu0 0.0
      %410 = vmatprep.subr.mxu0 0.0
      %411 = vmatpush1.msra.mxu0 0.0
      %412 = vmatprep.subr.mxu0 0.0
      %413 = vmatpush1.msra.mxu0 0.0
      %414 = vmatprep.subr.mxu0 0.0
      %415 = vmatpush1.msra.mxu0 0.0
      %416 = vmatprep.subr.mxu0 0.0
      %417 = vmatpush1.msra.mxu0 0.0
      %418 = vmatprep.subr.mxu0 0.0
      %419 = vmatpush1.msra.mxu0 0.0
      %420 = vmatprep.subr.mxu0 0.0
      %421 = vmatpush1.msra.mxu0 0.0
      %422 = vmatprep.subr.mxu0 0.0
      %423 = vmatpush1.msra.mxu0 0.0
      %424 = vmatprep.mubr.f32.mxu0 0.0
      %425 = vmatmul.mubr.f32.gmra.mrb[0].mxu0 %v355
      %v426 = vpop.f32.mrb[0].mxu0
      %v427 = vadd.f32 0.0, %v426
      %v428 = vpop.f32.mrb[0].mxu0
      %429 = vmatprep.mubr.f32.mxu0 0.0
      %430 = vmatmul.mubr.f32.gmra.mrb[0].mxu0 %v358
      %v431 = vpop.f32.mrb[0].mxu0
      %v432 = vadd.f32 0.0, %v431
      %v433 = vpop.f32.mrb[0].mxu0
      %434 = vdwg.mxu0
      %v435 = vld [vmem:[%s3] sm:$0xff]
      %v436 = vld [vmem:[%s3 + $0x8] sm:$0xff]
      %v437 = vld [vmem:[%s3 + $0x10] sm:$0xff]
      %v438 = vld [vmem:[%s3 + $0x18] sm:$0xff]
      %v439 = vld [vmem:[%s3 + $0x20] sm:$0xff]
      %v440 = vld [vmem:[%s3 + $0x28] sm:$0xff]
      %v441 = vld [vmem:[%s3 + $0x30] sm:$0xff]
      %v442 = vld [vmem:[%s3 + $0x38] sm:$0xff]
      %v443 = vld [vmem:[%s4] sm:$0x1]
      %v445 = vlaneseq
      %v446 = vshrl.u32 %v445, 7
      %v447 = vsub.s32 0, %v446
      %v448 = vrot.slane %v443, %v447
      %vm450 = vcmask 523264
      %v452 = vsel %vm450, %v427, 0
      %v455 = vsel %vm450, %v432, 0
      %457 = vmatprep.subr.mxu0 0.0
      %458 = vmatpush1.msra.mxu0 %v435
      %459 = vmatprep.subr.mxu0 0.0
      %460 = vmatpush1.msra.mxu0 %v436
      %461 = vmatprep.subr.mxu0 0.0
      %462 = vmatpush1.msra.mxu0 %v437
      %463 = vmatprep.subr.mxu0 0.0
      %464 = vmatpush1.msra.mxu0 %v438
      %465 = vmatprep.subr.mxu0 0.0
      %466 = vmatpush1.msra.mxu0 %v439
      %467 = vmatprep.subr.mxu0 0.0
      %468 = vmatpush1.msra.mxu0 %v440
      %469 = vmatprep.subr.mxu0 0.0
      %470 = vmatpush1.msra.mxu0 %v441
      %471 = vmatprep.subr.mxu0 0.0
      %472 = vmatpush1.msra.mxu0 %v442
      %473 = vmatprep.subr.mxu0 0.0
      %474 = vmatpush1.msra.mxu0 0.0
      %475 = vmatprep.subr.mxu0 0.0
      %476 = vmatpush1.msra.mxu0 0.0
      %477 = vmatprep.subr.mxu0 0.0
      %478 = vmatpush1.msra.mxu0 0.0
      %479 = vmatprep.subr.mxu0 0.0
      %480 = vmatpush1.msra.mxu0 0.0
      %481 = vmatprep.subr.mxu0 0.0
      %482 = vmatpush1.msra.mxu0 0.0
      %483 = vmatprep.subr.mxu0 0.0
      %484 = vmatpush1.msra.mxu0 0.0
      %485 = vmatprep.subr.mxu0 0.0
      %486 = vmatpush1.msra.mxu0 0.0
      %487 = vmatprep.subr.mxu0 0.0
      %488 = vmatpush1.msra.mxu0 0.0
      %489 = vmatprep.subr.mxu0 0.0
      %490 = vmatpush1.msra.mxu0 0.0
      %491 = vmatprep.subr.mxu0 0.0
      %492 = vmatpush1.msra.mxu0 0.0
      %493 = vmatprep.subr.mxu0 0.0
      %494 = vmatpush1.msra.mxu0 0.0
      %495 = vmatprep.subr.mxu0 0.0
      %496 = vmatpush1.msra.mxu0 0.0
      %497 = vmatprep.subr.mxu0 0.0
      %498 = vmatpush1.msra.mxu0 0.0
      %499 = vmatprep.subr.mxu0 0.0
      %500 = vmatpush1.msra.mxu0 0.0
      %501 = vmatprep.subr.mxu0 0.0
      %502 = vmatpush1.msra.mxu0 0.0
      %503 = vmatprep.subr.mxu0 0.0
      %504 = vmatpush1.msra.mxu0 0.0
      %505 = vmatprep.subr.mxu0 0.0
      %506 = vmatpush1.msra.mxu0 0.0
      %507 = vmatprep.subr.mxu0 0.0
      %508 = vmatpush1.msra.mxu0 0.0
      %509 = vmatprep.subr.mxu0 0.0
      %510 = vmatpush1.msra.mxu0 0.0
      %511 = vmatprep.subr.mxu0 0.0
      %512 = vmatpush1.msra.mxu0 0.0
      %513 = vmatprep.subr.mxu0 0.0
      %514 = vmatpush1.msra.mxu0 0.0
      %515 = vmatprep.subr.mxu0 0.0
      %516 = vmatpush1.msra.mxu0 0.0
      %517 = vmatprep.subr.mxu0 0.0
      %518 = vmatpush1.msra.mxu0 0.0
      %519 = vmatprep.subr.mxu0 0.0
      %520 = vmatpush1.msra.mxu0 0.0
      %521 = vmatprep.mubr.f32.mxu0 0.0
      %522 = vmatmul.mubr.f32.gmra.mrb[0].mxu0 %v452
      %v523 = vpop.f32.mrb[0].mxu0
      %v524 = vadd.f32 %v448, %v523
      %v525 = vpop.f32.mrb[0].mxu0
      %526 = vmatprep.mubr.f32.mxu0 0.0
      %527 = vmatmul.mubr.f32.gmra.mrb[0].mxu0 %v455
      %v528 = vpop.f32.mrb[0].mxu0
      %v529 = vadd.f32 %v448, %v528
      %v530 = vpop.f32.mrb[0].mxu0
      %531 = vdwg.mxu0
      %v532 = vlaneseq
      %vm533 = vcmp.ge.s32.totalorder %v532, 0
      %vm534 = vcmp.lt.s32.totalorder %v532, 192
      %vm535 = vmand %vm533, %vm534
      %536 = vst.msk [vmem:[#allocation2] ss:$8 sm:$0x3] %vm535, 0.0
      %537 = vst.msk [vmem:[#allocation2] ss:$8 sm:$0x0] %vm535, 0.0
      %s538 = scalar_lea.vmem [#allocation2], 33
      %539 = vst.msk [vmem:[%s538] ss:$8 sm:$0x3] %vm535, 0.0
      %540 = vst.msk [vmem:[%s538] ss:$8 sm:$0x0] %vm535, 0.0
      %vm543 = vcmask 1040384
      %v544 = vrot.slane %v524, 7
      %v545 = vrot.slane %v529, 7
      %v546 = vsel %vm543, %v544, %v545
      %550 = vst [vmem:[#allocation2] sm:$0xfe] %v544
      %551 = vst [vmem:[#allocation2 + $0x10] sm:$0xff] %v546
      %552 = vst [vmem:[#allocation2 + $0x20] sm:$0x1] %v545
      %v553 = vld [vmem:[%s344] sm:$0xff]
      %v554 = vld [vmem:[%s344 + $0x8] sm:$0xff]
      %v557 = vrot.slane %v553, 7
      %v558 = vrot.slane %v554, 7
      %v559 = vsel %vm543, %v557, %v558
      %vm563 = vcmask 523265
      %564 = vst.msk [vmem:[#allocation2 + $0x8] sm:$0xfe] %vm563, %v557
      %565 = vst.msk [vmem:[#allocation2 + $0x18] sm:$0xff] %vm450, %v559
      %vm566 = vcmask 516096
      %567 = vst.msk [vmem:[#allocation2 + $0x28] sm:$0x1] %vm566, %v558
      %v568 = vld [vmem:[#allocation2] sm:$0xff]
      %v569 = vld [vmem:[#allocation2 + $0x8] sm:$0xff]
      %v570 = vld [vmem:[#allocation2 + $0x10] sm:$0xff]
      %v571 = vld [vmem:[#allocation2 + $0x18] sm:$0xff]
      %v572 = vld [vmem:[%s5] sm:$0xff]
      %v573 = vld [vmem:[%s5 + $0x8] sm:$0xff]
      %v574 = vld [vmem:[%s5 + $0x10] sm:$0xff]
      %v575 = vld [vmem:[%s5 + $0x18] sm:$0xff]
      %v576 = vld [vmem:[%s5 + $0x20] sm:$0xff]
      %v577 = vld [vmem:[%s5 + $0x28] sm:$0xff]
      %v578 = vld [vmem:[%s5 + $0x30] sm:$0xff]
      %v579 = vld [vmem:[%s5 + $0x38] sm:$0xff]
      %v580 = vld [vmem:[%s5 + $0x40] sm:$0xff]
      %v581 = vld [vmem:[%s5 + $0x48] sm:$0xff]
      %v582 = vld [vmem:[%s5 + $0x50] sm:$0xff]
      %v583 = vld [vmem:[%s5 + $0x58] sm:$0xff]
      %v584 = vld [vmem:[%s5 + $0x60] sm:$0xff]
      %v585 = vld [vmem:[%s5 + $0x68] sm:$0xff]
      %v586 = vld [vmem:[%s5 + $0x70] sm:$0xff]
      %v587 = vld [vmem:[%s5 + $0x78] sm:$0xff]
      %v588 = vld [vmem:[%s5 + $0x80] sm:$0xff]
      %v589 = vld [vmem:[%s5 + $0x88] sm:$0xff]
      %v590 = vld [vmem:[%s5 + $0x90] sm:$0xff]
      %v591 = vld [vmem:[%s5 + $0x98] sm:$0xff]
      %v592 = vld [vmem:[%s5 + $0xa0] sm:$0xff]
      %v593 = vld [vmem:[%s5 + $0xa8] sm:$0xff]
      %v594 = vld [vmem:[%s5 + $0xb0] sm:$0xff]
      %v595 = vld [vmem:[%s5 + $0xb8] sm:$0xff]
      %v596 = vld [vmem:[#allocation2] sm:$0xfe]
      %v597 = vld [vmem:[#allocation2 + $0x8] sm:$0xfe]
      %v598 = vld [vmem:[#allocation2 + $0x20] sm:$0x1]
      %v599 = vld [vmem:[#allocation2 + $0x28] sm:$0x1]
      %s600 = scalar_lea.vmem %s5, 192
      %v601 = vld [vmem:[%s600] sm:$0xff]
      %v602 = vld [vmem:[%s600 + $0x8] sm:$0xff]
      %v603 = vld [vmem:[%s600 + $0x10] sm:$0xff]
      %v604 = vld [vmem:[%s600 + $0x18] sm:$0xff]
      %v605 = vld [vmem:[%s600 + $0x20] sm:$0xff]
      %v606 = vld [vmem:[%s600 + $0x28] sm:$0xff]
      %v607 = vld [vmem:[%s600 + $0x30] sm:$0xff]
      %v608 = vld [vmem:[%s600 + $0x38] sm:$0xff]
      %v609 = vld [vmem:[%s600 + $0x40] sm:$0xff]
      %v610 = vld [vmem:[%s600 + $0x48] sm:$0xff]
      %v611 = vld [vmem:[%s600 + $0x50] sm:$0xff]
      %v612 = vld [vmem:[%s600 + $0x58] sm:$0xff]
      %v613 = vld [vmem:[%s600 + $0x60] sm:$0xff]
      %v614 = vld [vmem:[%s600 + $0x68] sm:$0xff]
      %v615 = vld [vmem:[%s600 + $0x70] sm:$0xff]
      %v616 = vld [vmem:[%s600 + $0x78] sm:$0xff]
      %v617 = vld [vmem:[%s600 + $0x80] sm:$0xff]
      %v618 = vld [vmem:[%s600 + $0x88] sm:$0xff]
      %v619 = vld [vmem:[%s600 + $0x90] sm:$0xff]
      %v620 = vld [vmem:[%s600 + $0x98] sm:$0xff]
      %v621 = vld [vmem:[%s600 + $0xa0] sm:$0xff]
      %v622 = vld [vmem:[%s600 + $0xa8] sm:$0xff]
      %v623 = vld [vmem:[%s600 + $0xb0] sm:$0xff]
      %v624 = vld [vmem:[%s600 + $0xb8] sm:$0xff]
      %vm631 = vcmask 1046528
      %v632 = vrot.slane %v596, 1
      %v633 = vrot.slane %v570, 1
      %v634 = vsel %vm631, %v632, %v633
      %v635 = vrot.slane %v597, 1
      %v636 = vrot.slane %v571, 1
      %v637 = vsel %vm631, %v635, %v636
      %v638 = vrot.slane %v598, 1
      %v639 = vsel %vm631, %v633, %v638
      %v640 = vrot.slane %v599, 1
      %v641 = vsel %vm631, %v636, %v640
      %v644 = vsel %vm450, %v637, 0
      %v646 = vsel %vm450, %v641, 0
      %648 = vmatprep.subr.mxu0 0.0
      %649 = vmatpush1.msra.mxu0 %v601
      %650 = vmatprep.subr.mxu0 0.0
      %651 = vmatpush1.msra.mxu0 %v602
      %652 = vmatprep.subr.mxu0 0.0
      %653 = vmatpush1.msra.mxu0 %v603
      %654 = vmatprep.subr.mxu0 0.0
      %655 = vmatpush1.msra.mxu0 %v604
      %656 = vmatprep.subr.mxu0 0.0
      %657 = vmatpush1.msra.mxu0 %v605
      %658 = vmatprep.subr.mxu0 0.0
      %659 = vmatpush1.msra.mxu0 %v606
      %660 = vmatprep.subr.mxu0 0.0
      %661 = vmatpush1.msra.mxu0 %v607
      %662 = vmatprep.subr.mxu0 0.0
      %663 = vmatpush1.msra.mxu0 %v608
      %664 = vmatprep.subr.mxu0 0.0
      %665 = vmatpush1.msra.mxu0 %v609
      %666 = vmatprep.subr.mxu0 0.0
      %667 = vmatpush1.msra.mxu0 %v610
      %668 = vmatprep.subr.mxu0 0.0
      %669 = vmatpush1.msra.mxu0 %v611
      %670 = vmatprep.subr.mxu0 0.0
      %671 = vmatpush1.msra.mxu0 %v612
      %672 = vmatprep.subr.mxu0 0.0
      %673 = vmatpush1.msra.mxu0 %v613
      %674 = vmatprep.subr.mxu0 0.0
      %675 = vmatpush1.msra.mxu0 %v614
      %676 = vmatprep.subr.mxu0 0.0
      %677 = vmatpush1.msra.mxu0 %v615
      %678 = vmatprep.subr.mxu0 0.0
      %679 = vmatpush1.msra.mxu0 %v616
      %680 = vmatprep.subr.mxu0 0.0
      %681 = vmatpush1.msra.mxu0 %v617
      %682 = vmatprep.subr.mxu0 0.0
      %683 = vmatpush1.msra.mxu0 %v618
      %684 = vmatprep.subr.mxu0 0.0
      %685 = vmatpush1.msra.mxu0 %v619
      %686 = vmatprep.subr.mxu0 0.0
      %687 = vmatpush1.msra.mxu0 %v620
      %688 = vmatprep.subr.mxu0 0.0
      %689 = vmatpush1.msra.mxu0 %v621
      %690 = vmatprep.subr.mxu0 0.0
      %691 = vmatpush1.msra.mxu0 %v622
      %692 = vmatprep.subr.mxu0 0.0
      %693 = vmatpush1.msra.mxu0 %v623
      %694 = vmatprep.subr.mxu0 0.0
      %695 = vmatpush1.msra.mxu0 %v624
      %696 = vmatprep.subr.mxu0 0.0
      %697 = vmatpush1.msra.mxu0 0.0
      %698 = vmatprep.subr.mxu0 0.0
      %699 = vmatpush1.msra.mxu0 0.0
      %700 = vmatprep.subr.mxu0 0.0
      %701 = vmatpush1.msra.mxu0 0.0
      %702 = vmatprep.subr.mxu0 0.0
      %703 = vmatpush1.msra.mxu0 0.0
      %704 = vmatprep.subr.mxu0 0.0
      %705 = vmatpush1.msra.mxu0 0.0
      %706 = vmatprep.subr.mxu0 0.0
      %707 = vmatpush1.msra.mxu0 0.0
      %708 = vmatprep.subr.mxu0 0.0
      %709 = vmatpush1.msra.mxu0 0.0
      %710 = vmatprep.subr.mxu0 0.0
      %711 = vmatpush1.msra.mxu0 0.0
      %712 = vmatprep.mubr.f32.mxu0 %v644
      %713 = vmatmul.mubr.f32.gmra.mrb[0].mxu0 %v634
      %v714 = vpop.f32.mrb[0].mxu0
      %v715 = vadd.f32 0.0, %v714
      %v716 = vpop.f32.mrb[0].mxu0
      %717 = vmatprep.mubr.f32.mxu0 %v646
      %718 = vmatmul.mubr.f32.gmra.mrb[0].mxu0 %v639
      %v719 = vpop.f32.mrb[0].mxu0
      %v720 = vadd.f32 0.0, %v719
      %v721 = vpop.f32.mrb[0].mxu0
      %722 = vdwg.mxu0
      %v724 = vsel %vm450, %v569, 0
      %v726 = vsel %vm450, %v571, 0
      %728 = vmatprep.subr.mxu0 0.0
      %729 = vmatpush1.msra.mxu0 %v572
      %730 = vmatprep.subr.mxu0 0.0
      %731 = vmatpush1.msra.mxu0 %v573
      %732 = vmatprep.subr.mxu0 0.0
      %733 = vmatpush1.msra.mxu0 %v574
      %734 = vmatprep.subr.mxu0 0.0
      %735 = vmatpush1.msra.mxu0 %v575
      %736 = vmatprep.subr.mxu0 0.0
      %737 = vmatpush1.msra.mxu0 %v576
      %738 = vmatprep.subr.mxu0 0.0
      %739 = vmatpush1.msra.mxu0 %v577
      %740 = vmatprep.subr.mxu0 0.0
      %741 = vmatpush1.msra.mxu0 %v578
      %742 = vmatprep.subr.mxu0 0.0
      %743 = vmatpush1.msra.mxu0 %v579
      %744 = vmatprep.subr.mxu0 0.0
      %745 = vmatpush1.msra.mxu0 %v580
      %746 = vmatprep.subr.mxu0 0.0
      %747 = vmatpush1.msra.mxu0 %v581
      %748 = vmatprep.subr.mxu0 0.0
      %749 = vmatpush1.msra.mxu0 %v582
      %750 = vmatprep.subr.mxu0 0.0
      %751 = vmatpush1.msra.mxu0 %v583
      %752 = vmatprep.subr.mxu0 0.0
      %753 = vmatpush1.msra.mxu0 %v584
      %754 = vmatprep.subr.mxu0 0.0
      %755 = vmatpush1.msra.mxu0 %v585
      %756 = vmatprep.subr.mxu0 0.0
      %757 = vmatpush1.msra.mxu0 %v586
      %758 = vmatprep.subr.mxu0 0.0
      %759 = vmatpush1.msra.mxu0 %v587
      %760 = vmatprep.subr.mxu0 0.0
      %761 = vmatpush1.msra.mxu0 %v588
      %762 = vmatprep.subr.mxu0 0.0
      %763 = vmatpush1.msra.mxu0 %v589
      %764 = vmatprep.subr.mxu0 0.0
      %765 = vmatpush1.msra.mxu0 %v590
      %766 = vmatprep.subr.mxu0 0.0
      %767 = vmatpush1.msra.mxu0 %v591
      %768 = vmatprep.subr.mxu0 0.0
      %769 = vmatpush1.msra.mxu0 %v592
      %770 = vmatprep.subr.mxu0 0.0
      %771 = vmatpush1.msra.mxu0 %v593
      %772 = vmatprep.subr.mxu0 0.0
      %773 = vmatpush1.msra.mxu0 %v594
      %774 = vmatprep.subr.mxu0 0.0
      %775 = vmatpush1.msra.mxu0 %v595
      %776 = vmatprep.subr.mxu0 0.0
      %777 = vmatpush1.msra.mxu0 0.0
      %778 = vmatprep.subr.mxu0 0.0
      %779 = vmatpush1.msra.mxu0 0.0
      %780 = vmatprep.subr.mxu0 0.0
      %781 = vmatpush1.msra.mxu0 0.0
      %782 = vmatprep.subr.mxu0 0.0
      %783 = vmatpush1.msra.mxu0 0.0
      %784 = vmatprep.subr.mxu0 0.0
      %785 = vmatpush1.msra.mxu0 0.0
      %786 = vmatprep.subr.mxu0 0.0
      %787 = vmatpush1.msra.mxu0 0.0
      %788 = vmatprep.subr.mxu0 0.0
      %789 = vmatpush1.msra.mxu0 0.0
      %790 = vmatprep.subr.mxu0 0.0
      %791 = vmatpush1.msra.mxu0 0.0
      %792 = vmatprep.mubr.f32.mxu0 %v724
      %793 = vmatmul.mubr.f32.gmra.mrb[0].mxu0 %v568
      %v794 = vpop.f32.mrb[0].mxu0
      %v795 = vadd.f32 %v715, %v794
      %v796 = vpop.f32.mrb[0].mxu0
      %797 = vmatprep.mubr.f32.mxu0 %v726
      %798 = vmatmul.mubr.f32.gmra.mrb[0].mxu0 %v570
      %v799 = vpop.f32.mrb[0].mxu0
      %v800 = vadd.f32 %v720, %v799
      %v801 = vpop.f32.mrb[0].mxu0
      %802 = vdwg.mxu0
      %v803 = vld [vmem:[#allocation2] sm:$0xfc]
      %v804 = vld [vmem:[#allocation2 + $0x8] sm:$0xfc]
      %v805 = vld [vmem:[#allocation2 + $0x20] sm:$0x3]
      %v806 = vld [vmem:[#allocation2 + $0x28] sm:$0x3]
      %s807 = scalar_lea.vmem %s5, 384
      %v808 = vld [vmem:[%s807] sm:$0xff]
      %v809 = vld [vmem:[%s807 + $0x8] sm:$0xff]
      %v810 = vld [vmem:[%s807 + $0x10] sm:$0xff]
      %v811 = vld [vmem:[%s807 + $0x18] sm:$0xff]
      %v812 = vld [vmem:[%s807 + $0x20] sm:$0xff]
      %v813 = vld [vmem:[%s807 + $0x28] sm:$0xff]
      %v814 = vld [vmem:[%s807 + $0x30] sm:$0xff]
      %v815 = vld [vmem:[%s807 + $0x38] sm:$0xff]
      %v816 = vld [vmem:[%s807 + $0x40] sm:$0xff]
      %v817 = vld [vmem:[%s807 + $0x48] sm:$0xff]
      %v818 = vld [vmem:[%s807 + $0x50] sm:$0xff]
      %v819 = vld [vmem:[%s807 + $0x58] sm:$0xff]
      %v820 = vld [vmem:[%s807 + $0x60] sm:$0xff]
      %v821 = vld [vmem:[%s807 + $0x68] sm:$0xff]
      %v822 = vld [vmem:[%s807 + $0x70] sm:$0xff]
      %v823 = vld [vmem:[%s807 + $0x78] sm:$0xff]
      %v824 = vld [vmem:[%s807 + $0x80] sm:$0xff]
      %v825 = vld [vmem:[%s807 + $0x88] sm:$0xff]
      %v826 = vld [vmem:[%s807 + $0x90] sm:$0xff]
      %v827 = vld [vmem:[%s807 + $0x98] sm:$0xff]
      %v828 = vld [vmem:[%s807 + $0xa0] sm:$0xff]
      %v829 = vld [vmem:[%s807 + $0xa8] sm:$0xff]
      %v830 = vld [vmem:[%s807 + $0xb0] sm:$0xff]
      %v831 = vld [vmem:[%s807 + $0xb8] sm:$0xff]
      %vm836 = vcmask 1045504
      %v837 = vrot.slane %v803, 2
      %v838 = vrot.slane %v570, 2
      %v839 = vsel %vm836, %v837, %v838
      %v840 = vrot.slane %v804, 2
      %v841 = vrot.slane %v571, 2
      %v842 = vsel %vm836, %v840, %v841
      %v843 = vrot.slane %v805, 2
      %v844 = vsel %vm836, %v838, %v843
      %v845 = vrot.slane %v806, 2
      %v846 = vsel %vm836, %v841, %v845
      %v849 = vsel %vm450, %v842, 0
      %v851 = vsel %vm450, %v846, 0
      %853 = vmatprep.subr.mxu0 0.0
      %854 = vmatpush1.msra.mxu0 %v808
      %855 = vmatprep.subr.mxu0 0.0
      %856 = vmatpush1.msra.mxu0 %v809
      %857 = vmatprep.subr.mxu0 0.0
      %858 = vmatpush1.msra.mxu0 %v810
      %859 = vmatprep.subr.mxu0 0.0
      %860 = vmatpush1.msra.mxu0 %v811
      %861 = vmatprep.subr.mxu0 0.0
      %862 = vmatpush1.msra.mxu0 %v812
      %863 = vmatprep.subr.mxu0 0.0
      %864 = vmatpush1.msra.mxu0 %v813
      %865 = vmatprep.subr.mxu0 0.0
      %866 = vmatpush1.msra.mxu0 %v814
      %867 = vmatprep.subr.mxu0 0.0
      %868 = vmatpush1.msra.mxu0 %v815
      %869 = vmatprep.subr.mxu0 0.0
      %870 = vmatpush1.msra.mxu0 %v816
      %871 = vmatprep.subr.mxu0 0.0
      %872 = vmatpush1.msra.mxu0 %v817
      %873 = vmatprep.subr.mxu0 0.0
      %874 = vmatpush1.msra.mxu0 %v818
      %875 = vmatprep.subr.mxu0 0.0
      %876 = vmatpush1.msra.mxu0 %v819
      %877 = vmatprep.subr.mxu0 0.0
      %878 = vmatpush1.msra.mxu0 %v820
      %879 = vmatprep.subr.mxu0 0.0
      %880 = vmatpush1.msra.mxu0 %v821
      %881 = vmatprep.subr.mxu0 0.0
      %882 = vmatpush1.msra.mxu0 %v822
      %883 = vmatprep.subr.mxu0 0.0
      %884 = vmatpush1.msra.mxu0 %v823
      %885 = vmatprep.subr.mxu0 0.0
      %886 = vmatpush1.msra.mxu0 %v824
      %887 = vmatprep.subr.mxu0 0.0
      %888 = vmatpush1.msra.mxu0 %v825
      %889 = vmatprep.subr.mxu0 0.0
      %890 = vmatpush1.msra.mxu0 %v826
      %891 = vmatprep.subr.mxu0 0.0
      %892 = vmatpush1.msra.mxu0 %v827
      %893 = vmatprep.subr.mxu0 0.0
      %894 = vmatpush1.msra.mxu0 %v828
      %895 = vmatprep.subr.mxu0 0.0
      %896 = vmatpush1.msra.mxu0 %v829
      %897 = vmatprep.subr.mxu0 0.0
      %898 = vmatpush1.msra.mxu0 %v830
      %899 = vmatprep.subr.mxu0 0.0
      %900 = vmatpush1.msra.mxu0 %v831
      %901 = vmatprep.subr.mxu0 0.0
      %902 = vmatpush1.msra.mxu0 0.0
      %903 = vmatprep.subr.mxu0 0.0
      %904 = vmatpush1.msra.mxu0 0.0
      %905 = vmatprep.subr.mxu0 0.0
      %906 = vmatpush1.msra.mxu0 0.0
      %907 = vmatprep.subr.mxu0 0.0
      %908 = vmatpush1.msra.mxu0 0.0
      %909 = vmatprep.subr.mxu0 0.0
      %910 = vmatpush1.msra.mxu0 0.0
      %911 = vmatprep.subr.mxu0 0.0
      %912 = vmatpush1.msra.mxu0 0.0
      %913 = vmatprep.subr.mxu0 0.0
      %914 = vmatpush1.msra.mxu0 0.0
      %915 = vmatprep.subr.mxu0 0.0
      %916 = vmatpush1.msra.mxu0 0.0
      %917 = vmatprep.mubr.f32.mxu0 %v849
      %918 = vmatmul.mubr.f32.gmra.mrb[0].mxu0 %v839
      %v919 = vpop.f32.mrb[0].mxu0
      %v920 = vadd.f32 0.0, %v919
      %v921 = vpop.f32.mrb[0].mxu0
      %922 = vmatprep.mubr.f32.mxu0 %v851
      %923 = vmatmul.mubr.f32.gmra.mrb[0].mxu0 %v844
      %v924 = vpop.f32.mrb[0].mxu0
      %v925 = vadd.f32 0.0, %v924
      %v926 = vpop.f32.mrb[0].mxu0
      %927 = vdwg.mxu0
      %v928 = vadd.f32 %v795, %v920
      %v929 = vadd.f32 %v800, %v925
      %v930 = vld [vmem:[%s6] sm:$0x1]
      %v932 = vlaneseq
      %v933 = vshrl.u32 %v932, 7
      %v934 = vsub.s32 0, %v933
      %v935 = vrot.slane %v930, %v934
      %v937 = vadd.f32 %v928, %v935
      %v938 = vadd.f32 %v929, %v935
      %vm939 = vcmp.ge.f32.partialorder %v937, 0.0
      %vm940 = vcmp.ge.f32.partialorder %v938, 0.0
      %v941 = vmul.f32 %v937, 0.01
      %v942 = vmul.f32 %v938, 0.01
      %v943 = vsel %vm939, %v937, %v941
      %v944 = vsel %vm940, %v938, %v942
      %945 = vst [vmem:[#allocation3] sm:$0x1] 0.0
      %946 = vst [vmem:[#allocation3 + $0x11] sm:$0x1] 0.0
      %947 = vst [vmem:[#allocation3 + $0x1] sm:$0xff] %v943
      %948 = vst [vmem:[#allocation3 + $0x9] sm:$0xff] %v944
      %v949 = vld [vmem:[#allocation3] sm:$0xff]
      %v950 = vld [vmem:[#allocation3 + $0x8] sm:$0xff]
      %v951 = vld [vmem:[%s7] sm:$0xff]
      %v952 = vld [vmem:[%s7 + $0x8] sm:$0xff]
      %v953 = vld [vmem:[%s7 + $0x10] sm:$0xff]
      %v954 = vld [vmem:[%s7 + $0x18] sm:$0xff]
      %v955 = vld [vmem:[%s7 + $0x20] sm:$0xff]
      %v956 = vld [vmem:[%s7 + $0x28] sm:$0xff]
      %v957 = vld [vmem:[%s7 + $0x30] sm:$0xff]
      %v958 = vld [vmem:[%s7 + $0x38] sm:$0xff]
      %v959 = vld [vmem:[%s7 + $0x40] sm:$0xff]
      %v960 = vld [vmem:[%s7 + $0x48] sm:$0xff]
      %v961 = vld [vmem:[%s7 + $0x50] sm:$0xff]
      %v962 = vld [vmem:[%s7 + $0x58] sm:$0xff]
      %v963 = vld [vmem:[%s7 + $0x60] sm:$0xff]
      %v964 = vld [vmem:[%s7 + $0x68] sm:$0xff]
      %v965 = vld [vmem:[%s7 + $0x70] sm:$0xff]
      %v966 = vld [vmem:[%s7 + $0x78] sm:$0xff]
      %v967 = vld [vmem:[#allocation3 + $0x1] sm:$0xff]
      %v968 = vld [vmem:[#allocation3 + $0x9] sm:$0xff]
      %s969 = scalar_lea.vmem %s7, 128
      %v970 = vld [vmem:[%s969] sm:$0xff]
      %v971 = vld [vmem:[%s969 + $0x8] sm:$0xff]
      %v972 = vld [vmem:[%s969 + $0x10] sm:$0xff]
      %v973 = vld [vmem:[%s969 + $0x18] sm:$0xff]
      %v974 = vld [vmem:[%s969 + $0x20] sm:$0xff]
      %v975 = vld [vmem:[%s969 + $0x28] sm:$0xff]
      %v976 = vld [vmem:[%s969 + $0x30] sm:$0xff]
      %v977 = vld [vmem:[%s969 + $0x38] sm:$0xff]
      %v978 = vld [vmem:[%s969 + $0x40] sm:$0xff]
      %v979 = vld [vmem:[%s969 + $0x48] sm:$0xff]
      %v980 = vld [vmem:[%s969 + $0x50] sm:$0xff]
      %v981 = vld [vmem:[%s969 + $0x58] sm:$0xff]
      %v982 = vld [vmem:[%s969 + $0x60] sm:$0xff]
      %v983 = vld [vmem:[%s969 + $0x68] sm:$0xff]
      %v984 = vld [vmem:[%s969 + $0x70] sm:$0xff]
      %v985 = vld [vmem:[%s969 + $0x78] sm:$0xff]
      %986 = vmatprep.subr.mxu0 0.0
      %987 = vmatpush1.msra.mxu0 %v970
      %988 = vmatprep.subr.mxu0 0.0
      %989 = vmatpush1.msra.mxu0 %v971
      %990 = vmatprep.subr.mxu0 0.0
      %991 = vmatpush1.msra.mxu0 %v972
      %992 = vmatprep.subr.mxu0 0.0
      %993 = vmatpush1.msra.mxu0 %v973
      %994 = vmatprep.subr.mxu0 0.0
      %995 = vmatpush1.msra.mxu0 %v974
      %996 = vmatprep.subr.mxu0 0.0
      %997 = vmatpush1.msra.mxu0 %v975
      %998 = vmatprep.subr.mxu0 0.0
      %999 = vmatpush1.msra.mxu0 %v976
      %1000 = vmatprep.subr.mxu0 0.0
      %1001 = vmatpush1.msra.mxu0 %v977
      %1002 = vmatprep.subr.mxu0 0.0
      %1003 = vmatpush1.msra.mxu0 %v978
      %1004 = vmatprep.subr.mxu0 0.0
      %1005 = vmatpush1.msra.mxu0 %v979
      %1006 = vmatprep.subr.mxu0 0.0
      %1007 = vmatpush1.msra.mxu0 %v980
      %1008 = vmatprep.subr.mxu0 0.0
      %1009 = vmatpush1.msra.mxu0 %v981
      %1010 = vmatprep.subr.mxu0 0.0
      %1011 = vmatpush1.msra.mxu0 %v982
      %1012 = vmatprep.subr.mxu0 0.0
      %1013 = vmatpush1.msra.mxu0 %v983
      %1014 = vmatprep.subr.mxu0 0.0
      %1015 = vmatpush1.msra.mxu0 %v984
      %1016 = vmatprep.subr.mxu0 0.0
      %1017 = vmatpush1.msra.mxu0 %v985
      %1018 = vmatprep.subr.mxu0 0.0
      %1019 = vmatpush1.msra.mxu0 0.0
      %1020 = vmatprep.subr.mxu0 0.0
      %1021 = vmatpush1.msra.mxu0 0.0
      %1022 = vmatprep.subr.mxu0 0.0
      %1023 = vmatpush1.msra.mxu0 0.0
      %1024 = vmatprep.subr.mxu0 0.0
      %1025 = vmatpush1.msra.mxu0 0.0
      %1026 = vmatprep.subr.mxu0 0.0
      %1027 = vmatpush1.msra.mxu0 0.0
      %1028 = vmatprep.subr.mxu0 0.0
      %1029 = vmatpush1.msra.mxu0 0.0
      %1030 = vmatprep.subr.mxu0 0.0
      %1031 = vmatpush1.msra.mxu0 0.0
      %1032 = vmatprep.subr.mxu0 0.0
      %1033 = vmatpush1.msra.mxu0 0.0
      %1034 = vmatprep.subr.mxu0 0.0
      %1035 = vmatpush1.msra.mxu0 0.0
      %1036 = vmatprep.subr.mxu0 0.0
      %1037 = vmatpush1.msra.mxu0 0.0
      %1038 = vmatprep.subr.mxu0 0.0
      %1039 = vmatpush1.msra.mxu0 0.0
      %1040 = vmatprep.subr.mxu0 0.0
      %1041 = vmatpush1.msra.mxu0 0.0
      %1042 = vmatprep.subr.mxu0 0.0
      %1043 = vmatpush1.msra.mxu0 0.0
      %1044 = vmatprep.subr.mxu0 0.0
      %1045 = vmatpush1.msra.mxu0 0.0
      %1046 = vmatprep.subr.mxu0 0.0
      %1047 = vmatpush1.msra.mxu0 0.0
      %1048 = vmatprep.subr.mxu0 0.0
      %1049 = vmatpush1.msra.mxu0 0.0
      %1050 = vmatprep.mubr.f32.mxu0 0.0
      %1051 = vmatmul.mubr.f32.gmra.mrb[0].mxu0 %v967
      %v1052 = vpop.f32.mrb[0].mxu0
      %v1053 = vadd.f32 0.0, %v1052
      %v1054 = vpop.f32.mrb[0].mxu0
      %1055 = vmatprep.mubr.f32.mxu0 0.0
      %1056 = vmatmul.mubr.f32.gmra.mrb[0].mxu0 %v968
      %v1057 = vpop.f32.mrb[0].mxu0
      %v1058 = vadd.f32 0.0, %v1057
      %v1059 = vpop.f32.mrb[0].mxu0
      %1060 = vdwg.mxu0
      %1061 = vmatprep.subr.mxu0 0.0
      %1062 = vmatpush1.msra.mxu0 %v951
      %1063 = vmatprep.subr.mxu0 0.0
      %1064 = vmatpush1.msra.mxu0 %v952
      %1065 = vmatprep.subr.mxu0 0.0
      %1066 = vmatpush1.msra.mxu0 %v953
      %1067 = vmatprep.subr.mxu0 0.0
      %1068 = vmatpush1.msra.mxu0 %v954
      %1069 = vmatprep.subr.mxu0 0.0
      %1070 = vmatpush1.msra.mxu0 %v955
      %1071 = vmatprep.subr.mxu0 0.0
      %1072 = vmatpush1.msra.mxu0 %v956
      %1073 = vmatprep.subr.mxu0 0.0
      %1074 = vmatpush1.msra.mxu0 %v957
      %1075 = vmatprep.subr.mxu0 0.0
      %1076 = vmatpush1.msra.mxu0 %v958
      %1077 = vmatprep.subr.mxu0 0.0
      %1078 = vmatpush1.msra.mxu0 %v959
      %1079 = vmatprep.subr.mxu0 0.0
      %1080 = vmatpush1.msra.mxu0 %v960
      %1081 = vmatprep.subr.mxu0 0.0
      %1082 = vmatpush1.msra.mxu0 %v961
      %1083 = vmatprep.subr.mxu0 0.0
      %1084 = vmatpush1.msra.mxu0 %v962
      %1085 = vmatprep.subr.mxu0 0.0
      %1086 = vmatpush1.msra.mxu0 %v963
      %1087 = vmatprep.subr.mxu0 0.0
      %1088 = vmatpush1.msra.mxu0 %v964
      %1089 = vmatprep.subr.mxu0 0.0
      %1090 = vmatpush1.msra.mxu0 %v965
      %1091 = vmatprep.subr.mxu0 0.0
      %1092 = vmatpush1.msra.mxu0 %v966
      %1093 = vmatprep.subr.mxu0 0.0
      %1094 = vmatpush1.msra.mxu0 0.0
      %1095 = vmatprep.subr.mxu0 0.0
      %1096 = vmatpush1.msra.mxu0 0.0
      %1097 = vmatprep.subr.mxu0 0.0
      %1098 = vmatpush1.msra.mxu0 0.0
      %1099 = vmatprep.subr.mxu0 0.0
      %1100 = vmatpush1.msra.mxu0 0.0
      %1101 = vmatprep.subr.mxu0 0.0
      %1102 = vmatpush1.msra.mxu0 0.0
      %1103 = vmatprep.subr.mxu0 0.0
      %1104 = vmatpush1.msra.mxu0 0.0
      %1105 = vmatprep.subr.mxu0 0.0
      %1106 = vmatpush1.msra.mxu0 0.0
      %1107 = vmatprep.subr.mxu0 0.0
      %1108 = vmatpush1.msra.mxu0 0.0
      %1109 = vmatprep.subr.mxu0 0.0
      %1110 = vmatpush1.msra.mxu0 0.0
      %1111 = vmatprep.subr.mxu0 0.0
      %1112 = vmatpush1.msra.mxu0 0.0
      %1113 = vmatprep.subr.mxu0 0.0
      %1114 = vmatpush1.msra.mxu0 0.0
      %1115 = vmatprep.subr.mxu0 0.0
      %1116 = vmatpush1.msra.mxu0 0.0
      %1117 = vmatprep.subr.mxu0 0.0
      %1118 = vmatpush1.msra.mxu0 0.0
      %1119 = vmatprep.subr.mxu0 0.0
      %1120 = vmatpush1.msra.mxu0 0.0
      %1121 = vmatprep.subr.mxu0 0.0
      %1122 = vmatpush1.msra.mxu0 0.0
      %1123 = vmatprep.subr.mxu0 0.0
      %1124 = vmatpush1.msra.mxu0 0.0
      %1125 = vmatprep.mubr.f32.mxu0 0.0
      %1126 = vmatmul.mubr.f32.gmra.mrb[0].mxu0 %v949
      %v1127 = vpop.f32.mrb[0].mxu0
      %v1128 = vadd.f32 %v1053, %v1127
      %v1129 = vpop.f32.mrb[0].mxu0
      %1130 = vmatprep.mubr.f32.mxu0 0.0
      %1131 = vmatmul.mubr.f32.gmra.mrb[0].mxu0 %v950
      %v1132 = vpop.f32.mrb[0].mxu0
      %v1133 = vadd.f32 %v1058, %v1132
      %v1134 = vpop.f32.mrb[0].mxu0
      %1135 = vdwg.mxu0
      %v1136 = vld [vmem:[#allocation3 + $0x2] sm:$0xff]
      %v1137 = vld [vmem:[#allocation3 + $0xa] sm:$0xff]
      %s1138 = scalar_lea.vmem %s7, 256
      %v1139 = vld [vmem:[%s1138] sm:$0xff]
      %v1140 = vld [vmem:[%s1138 + $0x8] sm:$0xff]
      %v1141 = vld [vmem:[%s1138 + $0x10] sm:$0xff]
      %v1142 = vld [vmem:[%s1138 + $0x18] sm:$0xff]
      %v1143 = vld [vmem:[%s1138 + $0x20] sm:$0xff]
      %v1144 = vld [vmem:[%s1138 + $0x28] sm:$0xff]
      %v1145 = vld [vmem:[%s1138 + $0x30] sm:$0xff]
      %v1146 = vld [vmem:[%s1138 + $0x38] sm:$0xff]
      %v1147 = vld [vmem:[%s1138 + $0x40] sm:$0xff]
      %v1148 = vld [vmem:[%s1138 + $0x48] sm:$0xff]
      %v1149 = vld [vmem:[%s1138 + $0x50] sm:$0xff]
      %v1150 = vld [vmem:[%s1138 + $0x58] sm:$0xff]
      %v1151 = vld [vmem:[%s1138 + $0x60] sm:$0xff]
      %v1152 = vld [vmem:[%s1138 + $0x68] sm:$0xff]
      %v1153 = vld [vmem:[%s1138 + $0x70] sm:$0xff]
      %v1154 = vld [vmem:[%s1138 + $0x78] sm:$0xff]
      %1155 = vmatprep.subr.mxu0 0.0
      %1156 = vmatpush1.msra.mxu0 %v1139
      %1157 = vmatprep.subr.mxu0 0.0
      %1158 = vmatpush1.msra.mxu0 %v1140
      %1159 = vmatprep.subr.mxu0 0.0
      %1160 = vmatpush1.msra.mxu0 %v1141
      %1161 = vmatprep.subr.mxu0 0.0
      %1162 = vmatpush1.msra.mxu0 %v1142
      %1163 = vmatprep.subr.mxu0 0.0
      %1164 = vmatpush1.msra.mxu0 %v1143
      %1165 = vmatprep.subr.mxu0 0.0
      %1166 = vmatpush1.msra.mxu0 %v1144
      %1167 = vmatprep.subr.mxu0 0.0
      %1168 = vmatpush1.msra.mxu0 %v1145
      %1169 = vmatprep.subr.mxu0 0.0
      %1170 = vmatpush1.msra.mxu0 %v1146
      %1171 = vmatprep.subr.mxu0 0.0
      %1172 = vmatpush1.msra.mxu0 %v1147
      %1173 = vmatprep.subr.mxu0 0.0
      %1174 = vmatpush1.msra.mxu0 %v1148
      %1175 = vmatprep.subr.mxu0 0.0
      %1176 = vmatpush1.msra.mxu0 %v1149
      %1177 = vmatprep.subr.mxu0 0.0
      %1178 = vmatpush1.msra.mxu0 %v1150
      %1179 = vmatprep.subr.mxu0 0.0
      %1180 = vmatpush1.msra.mxu0 %v1151
      %1181 = vmatprep.subr.mxu0 0.0
      %1182 = vmatpush1.msra.mxu0 %v1152
      %1183 = vmatprep.subr.mxu0 0.0
      %1184 = vmatpush1.msra.mxu0 %v1153
      %1185 = vmatprep.subr.mxu0 0.0
      %1186 = vmatpush1.msra.mxu0 %v1154
      %1187 = vmatprep.subr.mxu0 0.0
      %1188 = vmatpush1.msra.mxu0 0.0
      %1189 = vmatprep.subr.mxu0 0.0
      %1190 = vmatpush1.msra.mxu0 0.0
      %1191 = vmatprep.subr.mxu0 0.0
      %1192 = vmatpush1.msra.mxu0 0.0
      %1193 = vmatprep.subr.mxu0 0.0
      %1194 = vmatpush1.msra.mxu0 0.0
      %1195 = vmatprep.subr.mxu0 0.0
      %1196 = vmatpush1.msra.mxu0 0.0
      %1197 = vmatprep.subr.mxu0 0.0
      %1198 = vmatpush1.msra.mxu0 0.0
      %1199 = vmatprep.subr.mxu0 0.0
      %1200 = vmatpush1.msra.mxu0 0.0
      %1201 = vmatprep.subr.mxu0 0.0
      %1202 = vmatpush1.msra.mxu0 0.0
      %1203 = vmatprep.subr.mxu0 0.0
      %1204 = vmatpush1.msra.mxu0 0.0
      %1205 = vmatprep.subr.mxu0 0.0
      %1206 = vmatpush1.msra.mxu0 0.0
      %1207 = vmatprep.subr.mxu0 0.0
      %1208 = vmatpush1.msra.mxu0 0.0
      %1209 = vmatprep.subr.mxu0 0.0
      %1210 = vmatpush1.msra.mxu0 0.0
      %1211 = vmatprep.subr.mxu0 0.0
      %1212 = vmatpush1.msra.mxu0 0.0
      %1213 = vmatprep.subr.mxu0 0.0
      %1214 = vmatpush1.msra.mxu0 0.0
      %1215 = vmatprep.subr.mxu0 0.0
      %1216 = vmatpush1.msra.mxu0 0.0
      %1217 = vmatprep.subr.mxu0 0.0
      %1218 = vmatpush1.msra.mxu0 0.0
      %1219 = vmatprep.mubr.f32.mxu0 0.0
      %1220 = vmatmul.mubr.f32.gmra.mrb[0].mxu0 %v1136
      %v1221 = vpop.f32.mrb[0].mxu0
      %v1222 = vadd.f32 0.0, %v1221
      %v1223 = vpop.f32.mrb[0].mxu0
      %1224 = vmatprep.mubr.f32.mxu0 0.0
      %1225 = vmatmul.mubr.f32.gmra.mrb[0].mxu0 %v1137
      %v1226 = vpop.f32.mrb[0].mxu0
      %v1227 = vadd.f32 0.0, %v1226
      %v1228 = vpop.f32.mrb[0].mxu0
      %1229 = vdwg.mxu0
      %v1230 = vadd.f32 %v1128, %v1222
      %v1231 = vadd.f32 %v1133, %v1227
      %v1232 = vld [vmem:[%s8] sm:$0x1]
      %v1234 = vlaneseq
      %v1235 = vshrl.u32 %v1234, 7
      %v1236 = vsub.s32 0, %v1235
      %v1237 = vrot.slane %v1232, %v1236
      %v1239 = vadd.f32 %v1230, %v1237
      %v1240 = vadd.f32 %v1231, %v1237
      %vm1241 = vcmp.ge.f32.partialorder %v1239, 0.0
      %vm1242 = vcmp.ge.f32.partialorder %v1240, 0.0
      %v1243 = vmul.f32 %v1239, 0.01
      %v1244 = vmul.f32 %v1240, 0.01
      %v1245 = vsel %vm1241, %v1239, %v1243
      %v1246 = vsel %vm1242, %v1240, %v1244
      %1247 = vst [vmem:[%s349] sm:$0xff] %v1245
      %1248 = vst [vmem:[%s349 + $0x8] sm:$0xff] %v1246
      %p1249 = scmp.lt.s32.totalorder %s20, 1
      %s1250 = scalar_select %p1249, %s20, 1
      %s1251 = smul.addr %s1250, 2
      %s1252 = smul.addr %s1251, 8
      %s1253 = scalar_lea.vmem %s9, %s1252
      // Predicated region
      $region57: #{up_block_forward.1} parent=55 // pred_check
        %p1254 = pneg %p237
      $region58: #{up_block_forward.1} parent=55 // pred_check_branch
        %1256 = sbr.rel (%p1254) target = $region60
      $region59: #{up_block_forward.1} parent=55 // pred_region
        _
      $region60: #{up_block_forward.1} parent=55 // pred_fallthru
        _
    $region56: #{up_block_forward.1} parent=5 // pred_fallthru
      _
    %p1257 = scmp.le.s32.totalorder 2, %s15
    // Predicated region
    $region61: #{up_block_forward.1} parent=5 // pred_check
      %p1258 = pneg %p1257
    $region62: #{up_block_forward.1} parent=5 // pred_check_branch
      %1260 = sbr.rel (%p1258) target = $region64
    $region63: #{up_block_forward.1} parent=5 // pred_region
      %s1261 = ssub.s32 %s15, 2
      // Predicated region
      $region65: #{up_block_forward.1} parent=63 // pred_check
        %p1262 = pneg %p243
      $region66: #{up_block_forward.1} parent=63 // pred_check_branch
        %1264 = sbr.rel (%p1262) target = $region68
      $region67: #{up_block_forward.1} parent=63 // pred_region
        %p1265 = scmp.lt.s32.totalorder %s21, 1
        %s1266 = scalar_select %p1265, %s21, 1
        %s1267 = smul.addr %s1266, 2
        %s1268 = smul.addr %s1267, 8
        %s1269 = scalar_lea.vmem %s9, %s1268
      $region68: #{up_block_forward.1} parent=63 // pred_fallthru
        _
    $region64: #{up_block_forward.1} parent=5 // pred_fallthru
      _
  $region6: #{up_block_forward.1} parent=0 // loop_footer
    %s19 = sadd.s32 1, %s15
  $region7: #{up_block_forward.1} parent=0 // loop_footer_branch
    %14 = sbr.rel target = $region3
  $region8: #{up_block_forward.1} parent=0 // loop_exit
    _

</llo_original>
